<compile_context>
chip_gen: v6e
topology: v6e:2x2x1
jax: 0.10.0
libtpu: 0.0.40
codegen_flags: <defaults>
</compile_context>

<pallas_src>
import functools

import jax
import jax.numpy as jnp
from jax.experimental import pallas as pl


# ---------------------------------------------------------------------------
# Fused Pallas kernel: 8 x (adj @ (h @ W) + b, ReLU)  ->  log_softmax(dim=1)
# ---------------------------------------------------------------------------
def _fused_gcn9_kernel(dims, x_ref, adj_ref, w1_ref, wmid_ref, w6_ref, w7_ref,
                       w8_ref, b_ref, o_ref):
    adj = adj_ref[...]          # (N, N)   bf16, loaded once, reused every layer
    h = x_ref[...]              # (N, F_in) bf16 activation, stays in VMEM/vregs

    def get_w(l):               # static selection of this layer's weight block
        if l == 0:
            return w1_ref[...]            # (nfeat, 256)
        if 1 <= l <= 4:
            return wmid_ref[l - 1]        # (256, 256) from the stacked block
        if l == 5:
            return w6_ref[...]            # (256, 128)
        if l == 6:
            return w7_ref[...]            # (128, 128)
        return w8_ref[...]                # (128, 64)

    num_layers = len(dims)
    for l in range(num_layers):           # static unroll (shapes differ)
        _, f_out = dims[l]
        w = get_w(l)                                       # bf16 (f_in, f_out)
        b = b_ref[l:l + 1, :f_out]                         # f32  (1, f_out)
        # PyTorch order: adj @ (h @ W) + b ; bf16 MXU inputs, f32 accumulate.
        xw = jnp.dot(h, w, preferred_element_type=jnp.float32)
        out = jnp.dot(adj, xw.astype(jnp.bfloat16),
                      preferred_element_type=jnp.float32)
        h_f32 = jnp.maximum(out + b, 0.0)                  # fused bias + ReLU (f32)
        h = h_f32.astype(jnp.bfloat16) if l < num_layers - 1 else h_f32

    # log_softmax along the feature axis (dim=1), numerically stable, f32.
    m = jnp.max(h, axis=1, keepdims=True)
    shifted = h - m
    lse = jnp.log(jnp.sum(jnp.exp(shifted), axis=1, keepdims=True))
    o_ref[...] = shifted - lse


def _full_spec(shape):
    nd = len(shape)
    return pl.BlockSpec(shape, lambda *_: (0,) * nd)


# ---------------------------------------------------------------------------
# Python wrapper: one grid-less pallas_call for the whole network
# ---------------------------------------------------------------------------
def gcn9_forward(x, adj, params):
    """log_softmax(relu(gc8(...relu(gc1(x, adj))...)), dim=1) in one kernel."""
    n, _ = x.shape
    dims = tuple((w.shape[0], w.shape[1]) for (w, _) in params)
    f_out_last = dims[-1][1]
    max_fout = max(f_out for _, f_out in dims)  # 256

    # bf16 inputs: halves the dominant weight/adj/x DMA bytes.
    x_bf = x.astype(jnp.bfloat16)
    adj_bf = adj.astype(jnp.bfloat16)
    w1 = params[0][0].astype(jnp.bfloat16)                       # (nfeat, 256)
    wmid = jnp.stack([params[i][0] for i in range(1, 5)]).astype(jnp.bfloat16)
    w6 = params[5][0].astype(jnp.bfloat16)                       # (256, 128)
    w7 = params[6][0].astype(jnp.bfloat16)                       # (128, 128)
    w8 = params[7][0].astype(jnp.bfloat16)                       # (128, 64)

    # All biases packed into one zero-padded f32 (L, 256) block.
    b_rows = []
    for (_, b) in params:
        b2 = b.reshape(1, -1).astype(jnp.float32)
        b_rows.append(jnp.pad(b2, ((0, 0), (0, max_fout - b2.shape[1]))))
    b_all = jnp.concatenate(b_rows, axis=0)

    # Advisory cost estimate (adj @ (h @ W) order).
    flops = 0
    bytes_accessed = x_bf.size * 2 + adj_bf.size * 2 + b_all.size * 4
    for (f_in, f_out) in dims:
        flops += 2 * n * f_in * f_out + 2 * n * n * f_out
        bytes_accessed += f_in * f_out * 2
    bytes_accessed += n * f_out_last * 4

    inputs = (x_bf, adj_bf, w1, wmid, w6, w7, w8, b_all)
    kernel = functools.partial(_fused_gcn9_kernel, dims)
    return pl.pallas_call(
        kernel,
        out_shape=jax.ShapeDtypeStruct((n, f_out_last), jnp.float32),
        in_specs=[_full_spec(a.shape) for a in inputs],
        out_specs=_full_spec((n, f_out_last)),
        cost_estimate=pl.CostEstimate(
            flops=flops,
            transcendentals=n * f_out_last + n,   # exp + log in log_softmax
            bytes_accessed=bytes_accessed,
        ),
    )(*inputs)


# ---------------------------------------------------------------------------
# Pure-JAX f32 reference (PyTorch semantics) for a sanity check
# ---------------------------------------------------------------------------
def gcn9_reference(x, adj, params):
    h = x
    for (w, b) in params:
        h = jnp.maximum(adj @ (h @ w) + b, 0.0)
    return jax.nn.log_softmax(h, axis=1)


# ---------------------------------------------------------------------------
# Parameter init (deterministic, mimics GraphConvolution's uniform init)
# ---------------------------------------------------------------------------
def init_gcn_params(key, nfeat):
    layer_dims = [
        (nfeat, 256),  # gc1
        (256, 256),    # gc2
        (256, 256),    # gc3
        (256, 256),    # gc4
        (256, 256),    # gc5
        (256, 128),    # gc6
        (128, 128),    # gc7
        (128, 64),     # gc8
        # gc9 exists in __init__ but is unused in forward(); not created here.
    ]
    params = []
    for (f_in, f_out) in layer_dims:
        key, kw, kb = jax.random.split(key, 3)
        stdv = 1.0 / jnp.sqrt(jnp.float32(f_out))
        w = jax.random.uniform(kw, (f_in, f_out), jnp.float32, -stdv, stdv)
        b = jax.random.uniform(kb, (1, f_out), jnp.float32, -stdv, stdv)
        params.append((w, b))
    return params


# ---------------------------------------------------------------------------
# Main
# ---------------------------------------------------------------------------
if __name__ == "__main__":
    N = 16       # number of graph nodes
    NFEAT = 32   # input feature dim

    key = jax.random.PRNGKey(0)
    kx, kadj, kparams = jax.random.split(key, 3)

    x = jax.random.normal(kx, (N, NFEAT), jnp.float32)

    # symmetric, row-normalized adjacency with self loops (typical GCN input)
    a = jax.random.uniform(kadj, (N, N), jnp.float32)
    a = (a + a.T) * 0.5 + jnp.eye(N, dtype=jnp.float32)
    adj = a / jnp.sum(a, axis=1, keepdims=True)

    params = init_gcn_params(kparams, NFEAT)

    fwd = jax.jit(gcn9_forward)
    out = fwd(x, adj, params)
    out = jax.block_until_ready(out)

    assert out.shape == (N, 64)
    # rows of log_softmax should exp-sum to 1
    assert jnp.allclose(jnp.sum(jnp.exp(out), axis=1), 1.0, atol=1e-3)
    # bf16-weight kernel vs. f32 reference (loose tolerance for bf16 drift)
    ref = gcn9_reference(x, adj, params)
    assert jnp.allclose(out, ref, atol=0.15), float(jnp.max(jnp.abs(out - ref)))
    print("KERNEL_OK")
</pallas_src>

<mosaic_0001>
module attributes {stable_mosaic.version = 11 : i64} {
  func.func @_fused_gcn9_kernel(%arg0: memref<16x32xbf16, #tpu.memory_space<vmem>>, %arg1: memref<16x16xbf16, #tpu.memory_space<vmem>>, %arg2: memref<32x256xbf16, #tpu.memory_space<vmem>>, %arg3: memref<4x256x256xbf16, #tpu.memory_space<vmem>>, %arg4: memref<256x128xbf16, #tpu.memory_space<vmem>>, %arg5: memref<128x128xbf16, #tpu.memory_space<vmem>>, %arg6: memref<128x64xbf16, #tpu.memory_space<vmem>>, %arg7: memref<8x256xf32, #tpu.memory_space<vmem>>, %arg8: memref<16x64xf32, #tpu.memory_space<vmem>>) attributes {dimension_semantics = [], scalar_prefetch = 0 : i64, scratch_operands = 0 : i64, tpu.core_type = #tpu.core_type<tc>} {
    %c0 = arith.constant 0 : index
    %c0_0 = arith.constant 0 : index
    %0 = vector.load %arg1[%c0, %c0_0] : memref<16x16xbf16, #tpu.memory_space<vmem>>, vector<16x16xbf16>
    %c0_1 = arith.constant 0 : index
    %c0_2 = arith.constant 0 : index
    %1 = vector.load %arg0[%c0_1, %c0_2] : memref<16x32xbf16, #tpu.memory_space<vmem>>, vector<16x32xbf16>
    %c0_3 = arith.constant 0 : index
    %c0_4 = arith.constant 0 : index
    %2 = vector.load %arg2[%c0_3, %c0_4] : memref<32x256xbf16, #tpu.memory_space<vmem>>, vector<32x256xbf16>
    %c0_5 = arith.constant 0 : index
    %c0_6 = arith.constant 0 : index
    %3 = vector.load %arg7[%c0_5, %c0_6] : memref<8x256xf32, #tpu.memory_space<vmem>>, vector<1x256xf32>
    %cst = arith.constant dense<0.000000e+00> : vector<16x256xf32>
    %4 = tpu.matmul %1, %2, %cst {dimension_numbers = #tpu.dot_dimension_numbers<[1], [0], [0], [1], [0, 0, 1, 1], [], []>} : vector<16x32xbf16>, vector<32x256xbf16>, vector<16x256xf32> -> vector<16x256xf32>
    %5 = arith.truncf %4 : vector<16x256xf32> to vector<16x256xbf16>
    %cst_7 = arith.constant dense<0.000000e+00> : vector<16x256xf32>
    %6 = tpu.matmul %0, %5, %cst_7 {dimension_numbers = #tpu.dot_dimension_numbers<[1], [0], [0], [1], [0, 0, 1, 1], [], []>} : vector<16x16xbf16>, vector<16x256xbf16>, vector<16x256xf32> -> vector<16x256xf32>
    %7 = vector.broadcast %3 : vector<1x256xf32> to vector<16x256xf32>
    %8 = arith.addf %6, %7 : vector<16x256xf32>
    %cst_8 = arith.constant 0.000000e+00 : f32
    %9 = vector.broadcast %cst_8 : f32 to vector<16x256xf32>
    %10 = arith.maximumf %8, %9 : vector<16x256xf32>
    %11 = arith.truncf %10 : vector<16x256xf32> to vector<16x256xbf16>
    %c0_9 = arith.constant 0 : index
    %c0_10 = arith.constant 0 : index
    %c0_11 = arith.constant 0 : index
    %12 = vector.load %arg3[%c0_9, %c0_10, %c0_11] : memref<4x256x256xbf16, #tpu.memory_space<vmem>>, vector<1x256x256xbf16>
    %13 = vector.shape_cast %12 : vector<1x256x256xbf16> to vector<256x256xbf16>
    %c1 = arith.constant 1 : index
    %c0_12 = arith.constant 0 : index
    %14 = vector.load %arg7[%c1, %c0_12] : memref<8x256xf32, #tpu.memory_space<vmem>>, vector<1x256xf32>
    %cst_13 = arith.constant dense<0.000000e+00> : vector<16x256xf32>
    %15 = tpu.matmul %11, %13, %cst_13 {dimension_numbers = #tpu.dot_dimension_numbers<[1], [0], [0], [1], [0, 0, 1, 1], [], []>} : vector<16x256xbf16>, vector<256x256xbf16>, vector<16x256xf32> -> vector<16x256xf32>
    %16 = arith.truncf %15 : vector<16x256xf32> to vector<16x256xbf16>
    %cst_14 = arith.constant dense<0.000000e+00> : vector<16x256xf32>
    %17 = tpu.matmul %0, %16, %cst_14 {dimension_numbers = #tpu.dot_dimension_numbers<[1], [0], [0], [1], [0, 0, 1, 1], [], []>} : vector<16x16xbf16>, vector<16x256xbf16>, vector<16x256xf32> -> vector<16x256xf32>
    %18 = vector.broadcast %14 : vector<1x256xf32> to vector<16x256xf32>
    %19 = arith.addf %17, %18 : vector<16x256xf32>
    %cst_15 = arith.constant 0.000000e+00 : f32
    %20 = vector.broadcast %cst_15 : f32 to vector<16x256xf32>
    %21 = arith.maximumf %19, %20 : vector<16x256xf32>
    %22 = arith.truncf %21 : vector<16x256xf32> to vector<16x256xbf16>
    %c1_16 = arith.constant 1 : index
    %c0_17 = arith.constant 0 : index
    %c0_18 = arith.constant 0 : index
    %23 = vector.load %arg3[%c1_16, %c0_17, %c0_18] : memref<4x256x256xbf16, #tpu.memory_space<vmem>>, vector<1x256x256xbf16>
    %24 = vector.shape_cast %23 : vector<1x256x256xbf16> to vector<256x256xbf16>
    %c2 = arith.constant 2 : index
    %c0_19 = arith.constant 0 : index
    %25 = vector.load %arg7[%c2, %c0_19] : memref<8x256xf32, #tpu.memory_space<vmem>>, vector<1x256xf32>
    %cst_20 = arith.constant dense<0.000000e+00> : vector<16x256xf32>
    %26 = tpu.matmul %22, %24, %cst_20 {dimension_numbers = #tpu.dot_dimension_numbers<[1], [0], [0], [1], [0, 0, 1, 1], [], []>} : vector<16x256xbf16>, vector<256x256xbf16>, vector<16x256xf32> -> vector<16x256xf32>
    %27 = arith.truncf %26 : vector<16x256xf32> to vector<16x256xbf16>
    %cst_21 = arith.constant dense<0.000000e+00> : vector<16x256xf32>
    %28 = tpu.matmul %0, %27, %cst_21 {dimension_numbers = #tpu.dot_dimension_numbers<[1], [0], [0], [1], [0, 0, 1, 1], [], []>} : vector<16x16xbf16>, vector<16x256xbf16>, vector<16x256xf32> -> vector<16x256xf32>
    %29 = vector.broadcast %25 : vector<1x256xf32> to vector<16x256xf32>
    %30 = arith.addf %28, %29 : vector<16x256xf32>
    %cst_22 = arith.constant 0.000000e+00 : f32
    %31 = vector.broadcast %cst_22 : f32 to vector<16x256xf32>
    %32 = arith.maximumf %30, %31 : vector<16x256xf32>
    %33 = arith.truncf %32 : vector<16x256xf32> to vector<16x256xbf16>
    %c2_23 = arith.constant 2 : index
    %c0_24 = arith.constant 0 : index
    %c0_25 = arith.constant 0 : index
    %34 = vector.load %arg3[%c2_23, %c0_24, %c0_25] : memref<4x256x256xbf16, #tpu.memory_space<vmem>>, vector<1x256x256xbf16>
    %35 = vector.shape_cast %34 : vector<1x256x256xbf16> to vector<256x256xbf16>
    %c3 = arith.constant 3 : index
    %c0_26 = arith.constant 0 : index
    %36 = vector.load %arg7[%c3, %c0_26] : memref<8x256xf32, #tpu.memory_space<vmem>>, vector<1x256xf32>
    %cst_27 = arith.constant dense<0.000000e+00> : vector<16x256xf32>
    %37 = tpu.matmul %33, %35, %cst_27 {dimension_numbers = #tpu.dot_dimension_numbers<[1], [0], [0], [1], [0, 0, 1, 1], [], []>} : vector<16x256xbf16>, vector<256x256xbf16>, vector<16x256xf32> -> vector<16x256xf32>
    %38 = arith.truncf %37 : vector<16x256xf32> to vector<16x256xbf16>
    %cst_28 = arith.constant dense<0.000000e+00> : vector<16x256xf32>
    %39 = tpu.matmul %0, %38, %cst_28 {dimension_numbers = #tpu.dot_dimension_numbers<[1], [0], [0], [1], [0, 0, 1, 1], [], []>} : vector<16x16xbf16>, vector<16x256xbf16>, vector<16x256xf32> -> vector<16x256xf32>
    %40 = vector.broadcast %36 : vector<1x256xf32> to vector<16x256xf32>
    %41 = arith.addf %39, %40 : vector<16x256xf32>
    %cst_29 = arith.constant 0.000000e+00 : f32
    %42 = vector.broadcast %cst_29 : f32 to vector<16x256xf32>
    %43 = arith.maximumf %41, %42 : vector<16x256xf32>
    %44 = arith.truncf %43 : vector<16x256xf32> to vector<16x256xbf16>
    %c3_30 = arith.constant 3 : index
    %c0_31 = arith.constant 0 : index
    %c0_32 = arith.constant 0 : index
    %45 = vector.load %arg3[%c3_30, %c0_31, %c0_32] : memref<4x256x256xbf16, #tpu.memory_space<vmem>>, vector<1x256x256xbf16>
    %46 = vector.shape_cast %45 : vector<1x256x256xbf16> to vector<256x256xbf16>
    %c4 = arith.constant 4 : index
    %c0_33 = arith.constant 0 : index
    %47 = vector.load %arg7[%c4, %c0_33] : memref<8x256xf32, #tpu.memory_space<vmem>>, vector<1x256xf32>
    %cst_34 = arith.constant dense<0.000000e+00> : vector<16x256xf32>
    %48 = tpu.matmul %44, %46, %cst_34 {dimension_numbers = #tpu.dot_dimension_numbers<[1], [0], [0], [1], [0, 0, 1, 1], [], []>} : vector<16x256xbf16>, vector<256x256xbf16>, vector<16x256xf32> -> vector<16x256xf32>
    %49 = arith.truncf %48 : vector<16x256xf32> to vector<16x256xbf16>
    %cst_35 = arith.constant dense<0.000000e+00> : vector<16x256xf32>
    %50 = tpu.matmul %0, %49, %cst_35 {dimension_numbers = #tpu.dot_dimension_numbers<[1], [0], [0], [1], [0, 0, 1, 1], [], []>} : vector<16x16xbf16>, vector<16x256xbf16>, vector<16x256xf32> -> vector<16x256xf32>
    %51 = vector.broadcast %47 : vector<1x256xf32> to vector<16x256xf32>
    %52 = arith.addf %50, %51 : vector<16x256xf32>
    %cst_36 = arith.constant 0.000000e+00 : f32
    %53 = vector.broadcast %cst_36 : f32 to vector<16x256xf32>
    %54 = arith.maximumf %52, %53 : vector<16x256xf32>
    %55 = arith.truncf %54 : vector<16x256xf32> to vector<16x256xbf16>
    %c0_37 = arith.constant 0 : index
    %c0_38 = arith.constant 0 : index
    %56 = vector.load %arg4[%c0_37, %c0_38] : memref<256x128xbf16, #tpu.memory_space<vmem>>, vector<256x128xbf16>
    %c5 = arith.constant 5 : index
    %c0_39 = arith.constant 0 : index
    %57 = vector.load %arg7[%c5, %c0_39] : memref<8x256xf32, #tpu.memory_space<vmem>>, vector<1x128xf32>
    %cst_40 = arith.constant dense<0.000000e+00> : vector<16x128xf32>
    %58 = tpu.matmul %55, %56, %cst_40 {dimension_numbers = #tpu.dot_dimension_numbers<[1], [0], [0], [1], [0, 0, 1, 1], [], []>} : vector<16x256xbf16>, vector<256x128xbf16>, vector<16x128xf32> -> vector<16x128xf32>
    %59 = arith.truncf %58 : vector<16x128xf32> to vector<16x128xbf16>
    %cst_41 = arith.constant dense<0.000000e+00> : vector<16x128xf32>
    %60 = tpu.matmul %0, %59, %cst_41 {dimension_numbers = #tpu.dot_dimension_numbers<[1], [0], [0], [1], [0, 0, 1, 1], [], []>} : vector<16x16xbf16>, vector<16x128xbf16>, vector<16x128xf32> -> vector<16x128xf32>
    %61 = vector.broadcast %57 : vector<1x128xf32> to vector<16x128xf32>
    %62 = arith.addf %60, %61 : vector<16x128xf32>
    %cst_42 = arith.constant 0.000000e+00 : f32
    %63 = vector.broadcast %cst_42 : f32 to vector<16x128xf32>
    %64 = arith.maximumf %62, %63 : vector<16x128xf32>
    %65 = arith.truncf %64 : vector<16x128xf32> to vector<16x128xbf16>
    %c0_43 = arith.constant 0 : index
    %c0_44 = arith.constant 0 : index
    %66 = vector.load %arg5[%c0_43, %c0_44] : memref<128x128xbf16, #tpu.memory_space<vmem>>, vector<128x128xbf16>
    %c6 = arith.constant 6 : index
    %c0_45 = arith.constant 0 : index
    %67 = vector.load %arg7[%c6, %c0_45] : memref<8x256xf32, #tpu.memory_space<vmem>>, vector<1x128xf32>
    %cst_46 = arith.constant dense<0.000000e+00> : vector<16x128xf32>
    %68 = tpu.matmul %65, %66, %cst_46 {dimension_numbers = #tpu.dot_dimension_numbers<[1], [0], [0], [1], [0, 0, 1, 1], [], []>} : vector<16x128xbf16>, vector<128x128xbf16>, vector<16x128xf32> -> vector<16x128xf32>
    %69 = arith.truncf %68 : vector<16x128xf32> to vector<16x128xbf16>
    %cst_47 = arith.constant dense<0.000000e+00> : vector<16x128xf32>
    %70 = tpu.matmul %0, %69, %cst_47 {dimension_numbers = #tpu.dot_dimension_numbers<[1], [0], [0], [1], [0, 0, 1, 1], [], []>} : vector<16x16xbf16>, vector<16x128xbf16>, vector<16x128xf32> -> vector<16x128xf32>
    %71 = vector.broadcast %67 : vector<1x128xf32> to vector<16x128xf32>
    %72 = arith.addf %70, %71 : vector<16x128xf32>
    %cst_48 = arith.constant 0.000000e+00 : f32
    %73 = vector.broadcast %cst_48 : f32 to vector<16x128xf32>
    %74 = arith.maximumf %72, %73 : vector<16x128xf32>
    %75 = arith.truncf %74 : vector<16x128xf32> to vector<16x128xbf16>
    %c0_49 = arith.constant 0 : index
    %c0_50 = arith.constant 0 : index
    %76 = vector.load %arg6[%c0_49, %c0_50] : memref<128x64xbf16, #tpu.memory_space<vmem>>, vector<128x64xbf16>
    %c7 = arith.constant 7 : index
    %c0_51 = arith.constant 0 : index
    %77 = vector.load %arg7[%c7, %c0_51] : memref<8x256xf32, #tpu.memory_space<vmem>>, vector<1x64xf32>
    %cst_52 = arith.constant dense<0.000000e+00> : vector<16x64xf32>
    %78 = tpu.matmul %75, %76, %cst_52 {dimension_numbers = #tpu.dot_dimension_numbers<[1], [0], [0], [1], [0, 0, 1, 1], [], []>} : vector<16x128xbf16>, vector<128x64xbf16>, vector<16x64xf32> -> vector<16x64xf32>
    %79 = arith.truncf %78 : vector<16x64xf32> to vector<16x64xbf16>
    %cst_53 = arith.constant dense<0.000000e+00> : vector<16x64xf32>
    %80 = tpu.matmul %0, %79, %cst_53 {dimension_numbers = #tpu.dot_dimension_numbers<[1], [0], [0], [1], [0, 0, 1, 1], [], []>} : vector<16x16xbf16>, vector<16x64xbf16>, vector<16x64xf32> -> vector<16x64xf32>
    %81 = vector.broadcast %77 : vector<1x64xf32> to vector<16x64xf32>
    %82 = arith.addf %80, %81 : vector<16x64xf32>
    %cst_54 = arith.constant 0.000000e+00 : f32
    %83 = vector.broadcast %cst_54 : f32 to vector<16x64xf32>
    %84 = arith.maximumf %82, %83 : vector<16x64xf32>
    %cst_55 = arith.constant dense<0xFF800000> : vector<16xf32>
    %85 = vector.multi_reduction <maximumf>, %84, %cst_55 [1] : vector<16x64xf32> to vector<16xf32>
    %86 = vector.shape_cast %85 : vector<16xf32> to vector<16x1xf32>
    %87 = vector.broadcast %86 : vector<16x1xf32> to vector<16x64xf32>
    %88 = arith.subf %84, %87 : vector<16x64xf32>
    %89 = math.exp %88 : vector<16x64xf32>
    %cst_56 = arith.constant dense<0.000000e+00> : vector<16xf32>
    %90 = vector.multi_reduction <add>, %89, %cst_56 [1] : vector<16x64xf32> to vector<16xf32>
    %91 = vector.shape_cast %90 : vector<16xf32> to vector<16x1xf32>
    %92 = math.log %91 : vector<16x1xf32>
    %93 = vector.broadcast %92 : vector<16x1xf32> to vector<16x64xf32>
    %94 = arith.subf %88, %93 : vector<16x64xf32>
    %c0_57 = arith.constant 0 : index
    %c0_58 = arith.constant 0 : index
    %95 = vector.load %arg8[%c0_57, %c0_58] : memref<16x64xf32, #tpu.memory_space<vmem>>, vector<16x64xf32>
    tpu.vector_store %arg8[%c0_57, %c0_58], %94 {strides = array<i32>} : memref<16x64xf32, #tpu.memory_space<vmem>>, vector<16x64xf32>,
    return
  }
}

</mosaic_0001>

<llo_original>
// kernel: gcn9_forward.1
$region0: #{gcn9_forward.1}
  #allocation0 [shape = 'u32[]', space=smem, size = 0x4, offset = 0x4, fixed_abs, tag = 'smem constant byte address 0x4 - core index']
  #allocation1 [shape = 'u32[144,128]{1,0:T(1,128)}', space=vmem, size = 0x12000, scoped, tag = 'internal scratch']
  %s0 = inlined_call_operand.vmem [shape: bf16[16,32], index: 0, kind: input, shape index: {}]
  %s1 = inlined_call_operand.vmem [shape: bf16[16,16], index: 1, kind: input, shape index: {}]
  %s2 = inlined_call_operand.vmem [shape: bf16[32,256], index: 2, kind: input, shape index: {}]
  %s3 = inlined_call_operand.vmem [shape: bf16[4,256,256], index: 3, kind: input, shape index: {}]
  %s4 = inlined_call_operand.vmem [shape: bf16[256,128], index: 4, kind: input, shape index: {}]
  %s5 = inlined_call_operand.vmem [shape: bf16[128,128], index: 5, kind: input, shape index: {}]
  %s6 = inlined_call_operand.vmem [shape: bf16[128,64], index: 6, kind: input, shape index: {}]
  %s7 = inlined_call_operand.vmem [shape: f32[8,256], index: 7, kind: input, shape index: {}]
  %s8 = inlined_call_operand.hbm [shape: f32[16,64], index: 8, kind: output, shape index: {}]
  %s9 = sld [smem:[#allocation0]]
  $region42: #{gcn9_forward.1} parent=0
    _
  %s11 = ssub.s32 1, %s9
  %s12 = scalar_select 0, %s11, %s9
  $region1: #{gcn9_forward.1} parent=0
    #allocation2 [shape = 'u8[8192]{0}', space=vmem, size = 0x2000, scoped, tag = 'output window, operand 0, single buffered']
    #allocation3 [shape = 's32[1]{0}', space=sflag, size = 0x4, scoped, tag = 'scoped memory for gcn9_forward.1']
    %13 = vsyncpa [#allocation3], 0
    // Predicated region
    $region2: #{gcn9_forward.1} parent=1 // pred_check
      _
    $region3: #{gcn9_forward.1} parent=1 // pred_check_branch
      %15 = sbr.rel (0) target = $region5
    $region4: #{gcn9_forward.1} parent=1 // pred_region
      _
    $region5: #{gcn9_forward.1} parent=1 // pred_fallthru
      _
    // Predicated region
    $region6: #{gcn9_forward.1} parent=1 // pred_check
      _
    $region7: #{gcn9_forward.1} parent=1 // pred_check_branch
      %17 = sbr.rel (0) target = $region9
    $region8: #{gcn9_forward.1} parent=1 // pred_region
      _
    $region9: #{gcn9_forward.1} parent=1 // pred_fallthru
      _
    // Predicated region
    $region10: #{gcn9_forward.1} parent=1 // pred_check
      _
    $region11: #{gcn9_forward.1} parent=1 // pred_check_branch
      %19 = sbr.rel (0) target = $region13
    $region12: #{gcn9_forward.1} parent=1 // pred_region
      _
    $region13: #{gcn9_forward.1} parent=1 // pred_fallthru
      _
    // Predicated region
    $region14: #{gcn9_forward.1} parent=1 // pred_check
      _
    $region15: #{gcn9_forward.1} parent=1 // pred_check_branch
      %21 = sbr.rel (0) target = $region17
    $region16: #{gcn9_forward.1} parent=1 // pred_region
      _
    $region17: #{gcn9_forward.1} parent=1 // pred_fallthru
      _
    // Predicated region
    $region18: #{gcn9_forward.1} parent=1 // pred_check
      _
    $region19: #{gcn9_forward.1} parent=1 // pred_check_branch
      %23 = sbr.rel (0) target = $region21
    $region20: #{gcn9_forward.1} parent=1 // pred_region
      _
    $region21: #{gcn9_forward.1} parent=1 // pred_fallthru
      _
    // Predicated region
    $region22: #{gcn9_forward.1} parent=1 // pred_check
      _
    $region23: #{gcn9_forward.1} parent=1 // pred_check_branch
      %25 = sbr.rel (0) target = $region25
    $region24: #{gcn9_forward.1} parent=1 // pred_region
      _
    $region25: #{gcn9_forward.1} parent=1 // pred_fallthru
      _
    // Predicated region
    $region26: #{gcn9_forward.1} parent=1 // pred_check
      _
    $region27: #{gcn9_forward.1} parent=1 // pred_check_branch
      %27 = sbr.rel (0) target = $region29
    $region28: #{gcn9_forward.1} parent=1 // pred_region
      _
    $region29: #{gcn9_forward.1} parent=1 // pred_fallthru
      _
    // Predicated region
    $region30: #{gcn9_forward.1} parent=1 // pred_check
      _
    $region31: #{gcn9_forward.1} parent=1 // pred_check_branch
      %29 = sbr.rel (0) target = $region33
    $region32: #{gcn9_forward.1} parent=1 // pred_region
      _
    $region33: #{gcn9_forward.1} parent=1 // pred_fallthru
      _
    %v31 = vld [vmem:[%s1] sm:$0xf]
    %v32 = vld [vmem:[%s1 + $0x4] sm:$0xf]
    %v33 = vld [vmem:[%s0] sm:$0xf]
    %v34 = vld [vmem:[%s0 + $0x4] sm:$0xf]
    %v35 = vld [vmem:[%s2] sm:$0xff]
    %v36 = vld [vmem:[%s2 + $0x8] sm:$0xff]
    %v37 = vld [vmem:[%s2 + $0x10] sm:$0xff]
    %v38 = vld [vmem:[%s2 + $0x18] sm:$0xff]
    %v39 = vld [vmem:[%s7] ss:$8 sm:$0x3]
    %v42 = vunpack.c.l.b16 %v33
    %v43 = vunpack.c.l.b16 %v34
    %v44 = vpack.c.b16 %v43, %v42
    %v49 = vunpack.c.l.b16 %v35
    %v50 = vunpack.c.h.b16 %v35
    %v51 = vunpack.c.l.b16 %v36
    %v52 = vunpack.c.h.b16 %v36
    %v53 = vunpack.c.l.b16 %v37
    %v54 = vunpack.c.h.b16 %v37
    %v55 = vunpack.c.l.b16 %v38
    %v56 = vunpack.c.h.b16 %v38
    %v57 = vpack.c.b16 %v51, %v49
    %v58 = vpack.c.b16 %v52, %v50
    %v59 = vpack.c.b16 %v55, %v53
    %v60 = vpack.c.b16 %v56, %v54
    %vm65 = vcmask 261120
    %v67 = vsel %vm65, %v44, 0
    %69 = vmatprep.subr.bf16.mxu0 0
    %70 = vmatpush1.bf16.msra.mxu0 0
    %71 = vmatprep.subr.bf16.mxu0 0
    %72 = vmatpush1.bf16.msra.mxu0 0
    %73 = vmatprep.subr.bf16.mxu0 0
    %74 = vmatpush1.bf16.msra.mxu0 0
    %75 = vmatprep.subr.bf16.mxu0 0
    %76 = vmatpush1.bf16.msra.mxu0 0
    %77 = vmatprep.subr.bf16.mxu0 0
    %78 = vmatpush1.bf16.msra.mxu0 0
    %79 = vmatprep.subr.bf16.mxu0 0
    %80 = vmatpush1.bf16.msra.mxu0 0
    %81 = vmatprep.subr.bf16.mxu0 %v60
    %82 = vmatpush1.bf16.msra.mxu0 %v59
    %83 = vmatprep.subr.bf16.mxu0 %v58
    %84 = vmatpush1.bf16.msra.mxu0 %v57
    %85 = vmatprep.subr.bf16.mxu0 0
    %86 = vmatpush2.bf16.msra.mxu0 0
    %87 = vmatprep.subr.bf16.mxu0 0
    %88 = vmatpush2.bf16.msra.mxu0 0
    %89 = vmatprep.subr.bf16.mxu0 0
    %90 = vmatpush2.bf16.msra.mxu0 0
    %91 = vmatprep.subr.bf16.mxu0 0
    %92 = vmatpush2.bf16.msra.mxu0 0
    %93 = vmatprep.subr.bf16.mxu0 0
    %94 = vmatpush2.bf16.msra.mxu0 0
    %95 = vmatprep.subr.bf16.mxu0 0
    %96 = vmatpush2.bf16.msra.mxu0 0
    %97 = vmatprep.subr.bf16.mxu0 0
    %98 = vmatpush2.bf16.msra.mxu0 0
    %99 = vmatprep.subr.bf16.mxu0 0
    %100 = vmatpush2.bf16.msra.mxu0 0
    %101 = vmatprep.mubr.bf16.mxu0 0
    %102 = vmatmul.mubr.bf16.gmra.mxu0 %v67
    %v103 = vpop.f32.mrf.mxu0
    %v104 = vadd.f32 0.0, %v103
    %v105 = vpop.f32.mrf.mxu0
    %v106 = vadd.f32 0.0, %v105
    %v107 = vpop.f32.mrf.mxu0
    %v108 = vadd.f32 0.0, %v107
    %v109 = vpop.f32.mrf.mxu0
    %v110 = vadd.f32 0.0, %v109
    %111 = vdwg.mxu0
    %v112 = vpack.c.bf16 %v108, %v104
    %v113 = vpack.c.bf16 %v110, %v106
    %v115 = vlaneseq
    %v116 = vshrl.u32 %v115, 7
    %v117 = vsub.s32 0, %v116
    %v118 = vrot.slane %v39, %v117
    %v119 = vlaneseq
    %v120 = vshrl.u32 %v119, 7
    %v121 = vsub.s32 1, %v120
    %v122 = vrot.slane %v39, %v121
    %v127 = vunpack.c.l.b16 %v31
    %v128 = vunpack.c.l.b16 %v32
    %v129 = vpack.c.b16 %v128, %v127
    %vm130 = vcmask 130048
    %v132 = vsel %vm130, %v129, 0
    %134 = vmatprep.subr.bf16.mxu0 0
    %135 = vmatpush1.bf16.msra.mxu0 0
    %136 = vmatprep.subr.bf16.mxu0 0
    %137 = vmatpush1.bf16.msra.mxu0 0
    %138 = vmatprep.subr.bf16.mxu0 0
    %139 = vmatpush1.bf16.msra.mxu0 0
    %140 = vmatprep.subr.bf16.mxu0 0
    %141 = vmatpush1.bf16.msra.mxu0 0
    %142 = vmatprep.subr.bf16.mxu0 0
    %143 = vmatpush1.bf16.msra.mxu0 0
    %144 = vmatprep.subr.bf16.mxu0 0
    %145 = vmatpush1.bf16.msra.mxu0 0
    %146 = vmatprep.subr.bf16.mxu0 0
    %147 = vmatpush1.bf16.msra.mxu0 0
    %148 = vmatprep.subr.bf16.mxu0 %v113
    %149 = vmatpush1.bf16.msra.mxu0 %v112
    %150 = vmatprep.subr.bf16.mxu0 0
    %151 = vmatpush2.bf16.msra.mxu0 0
    %152 = vmatprep.subr.bf16.mxu0 0
    %153 = vmatpush2.bf16.msra.mxu0 0
    %154 = vmatprep.subr.bf16.mxu0 0
    %155 = vmatpush2.bf16.msra.mxu0 0
    %156 = vmatprep.subr.bf16.mxu0 0
    %157 = vmatpush2.bf16.msra.mxu0 0
    %158 = vmatprep.subr.bf16.mxu0 0
    %159 = vmatpush2.bf16.msra.mxu0 0
    %160 = vmatprep.subr.bf16.mxu0 0
    %161 = vmatpush2.bf16.msra.mxu0 0
    %162 = vmatprep.subr.bf16.mxu0 0
    %163 = vmatpush2.bf16.msra.mxu0 0
    %164 = vmatprep.subr.bf16.mxu0 0
    %165 = vmatpush2.bf16.msra.mxu0 0
    %166 = vmatprep.mubr.bf16.mxu0 0
    %167 = vmatmul.mubr.bf16.gmra.mxu0 %v132
    %v168 = vpop.f32.mrf.mxu0
    %v169 = vadd.f32 %v118, %v168
    %v170 = vpop.f32.mrf.mxu0
    %v171 = vadd.f32 %v122, %v170
    %v172 = vpop.f32.mrf.mxu0
    %v173 = vadd.f32 %v118, %v172
    %v174 = vpop.f32.mrf.mxu0
    %v175 = vadd.f32 %v122, %v174
    %176 = vdwg.mxu0
    %v177 = vmax.f32 %v169, 0.0
    %v178 = vmax.f32 %v171, 0.0
    %v179 = vmax.f32 %v173, 0.0
    %v180 = vmax.f32 %v175, 0.0
    %v181 = vpack.c.bf16 %v179, %v177
    %v182 = vpack.c.bf16 %v180, %v178
    %v183 = vld [vmem:[%s3] sm:$0xff]
    %v184 = vld [vmem:[%s3 + $0x8] sm:$0xff]
    %v185 = vld [vmem:[%s3 + $0x10] sm:$0xff]
    %v186 = vld [vmem:[%s3 + $0x18] sm:$0xff]
    %v187 = vld [vmem:[%s3 + $0x20] sm:$0xff]
    %v188 = vld [vmem:[%s3 + $0x28] sm:$0xff]
    %v189 = vld [vmem:[%s3 + $0x30] sm:$0xff]
    %v190 = vld [vmem:[%s3 + $0x38] sm:$0xff]
    %v191 = vld [vmem:[%s3 + $0x40] sm:$0xff]
    %v192 = vld [vmem:[%s3 + $0x48] sm:$0xff]
    %v193 = vld [vmem:[%s3 + $0x50] sm:$0xff]
    %v194 = vld [vmem:[%s3 + $0x58] sm:$0xff]
    %v195 = vld [vmem:[%s3 + $0x60] sm:$0xff]
    %v196 = vld [vmem:[%s3 + $0x68] sm:$0xff]
    %v197 = vld [vmem:[%s3 + $0x70] sm:$0xff]
    %v198 = vld [vmem:[%s3 + $0x78] sm:$0xff]
    %v199 = vld [vmem:[%s3 + $0x80] sm:$0xff]
    %v200 = vld [vmem:[%s3 + $0x88] sm:$0xff]
    %v201 = vld [vmem:[%s3 + $0x90] sm:$0xff]
    %v202 = vld [vmem:[%s3 + $0x98] sm:$0xff]
    %v203 = vld [vmem:[%s3 + $0xa0] sm:$0xff]
    %v204 = vld [vmem:[%s3 + $0xa8] sm:$0xff]
    %v205 = vld [vmem:[%s3 + $0xb0] sm:$0xff]
    %v206 = vld [vmem:[%s3 + $0xb8] sm:$0xff]
    %v207 = vld [vmem:[%s3 + $0xc0] sm:$0xff]
    %v208 = vld [vmem:[%s3 + $0xc8] sm:$0xff]
    %v209 = vld [vmem:[%s3 + $0xd0] sm:$0xff]
    %v210 = vld [vmem:[%s3 + $0xd8] sm:$0xff]
    %v211 = vld [vmem:[%s3 + $0xe0] sm:$0xff]
    %v212 = vld [vmem:[%s3 + $0xe8] sm:$0xff]
    %v213 = vld [vmem:[%s3 + $0xf0] sm:$0xff]
    %v214 = vld [vmem:[%s3 + $0xf8] sm:$0xff]
    %s215 = scalar_lea.vmem %s7, 1
    %v216 = vld [vmem:[%s215] ss:$8 sm:$0x3]
    %v249 = vunpack.c.l.b16 %v183
    %v250 = vunpack.c.h.b16 %v183
    %v251 = vunpack.c.l.b16 %v184
    %v252 = vunpack.c.h.b16 %v184
    %v253 = vunpack.c.l.b16 %v185
    %v254 = vunpack.c.h.b16 %v185
    %v255 = vunpack.c.l.b16 %v186
    %v256 = vunpack.c.h.b16 %v186
    %v257 = vunpack.c.l.b16 %v187
    %v258 = vunpack.c.h.b16 %v187
    %v259 = vunpack.c.l.b16 %v188
    %v260 = vunpack.c.h.b16 %v188
    %v261 = vunpack.c.l.b16 %v189
    %v262 = vunpack.c.h.b16 %v189
    %v263 = vunpack.c.l.b16 %v190
    %v264 = vunpack.c.h.b16 %v190
    %v265 = vunpack.c.l.b16 %v191
    %v266 = vunpack.c.h.b16 %v191
    %v267 = vunpack.c.l.b16 %v192
    %v268 = vunpack.c.h.b16 %v192
    %v269 = vunpack.c.l.b16 %v193
    %v270 = vunpack.c.h.b16 %v193
    %v271 = vunpack.c.l.b16 %v194
    %v272 = vunpack.c.h.b16 %v194
    %v273 = vunpack.c.l.b16 %v195
    %v274 = vunpack.c.h.b16 %v195
    %v275 = vunpack.c.l.b16 %v196
    %v276 = vunpack.c.h.b16 %v196
    %v277 = vunpack.c.l.b16 %v197
    %v278 = vunpack.c.h.b16 %v197
    %v279 = vunpack.c.l.b16 %v198
    %v280 = vunpack.c.h.b16 %v198
    %v281 = vunpack.c.l.b16 %v199
    %v282 = vunpack.c.h.b16 %v199
    %v283 = vunpack.c.l.b16 %v200
    %v284 = vunpack.c.h.b16 %v200
    %v285 = vunpack.c.l.b16 %v201
    %v286 = vunpack.c.h.b16 %v201
    %v287 = vunpack.c.l.b16 %v202
    %v288 = vunpack.c.h.b16 %v202
    %v289 = vunpack.c.l.b16 %v203
    %v290 = vunpack.c.h.b16 %v203
    %v291 = vunpack.c.l.b16 %v204
    %v292 = vunpack.c.h.b16 %v204
    %v293 = vunpack.c.l.b16 %v205
    %v294 = vunpack.c.h.b16 %v205
    %v295 = vunpack.c.l.b16 %v206
    %v296 = vunpack.c.h.b16 %v206
    %v297 = vunpack.c.l.b16 %v207
    %v298 = vunpack.c.h.b16 %v207
    %v299 = vunpack.c.l.b16 %v208
    %v300 = vunpack.c.h.b16 %v208
    %v301 = vunpack.c.l.b16 %v209
    %v302 = vunpack.c.h.b16 %v209
    %v303 = vunpack.c.l.b16 %v210
    %v304 = vunpack.c.h.b16 %v210
    %v305 = vunpack.c.l.b16 %v211
    %v306 = vunpack.c.h.b16 %v211
    %v307 = vunpack.c.l.b16 %v212
    %v308 = vunpack.c.h.b16 %v212
    %v309 = vunpack.c.l.b16 %v213
    %v310 = vunpack.c.h.b16 %v213
    %v311 = vunpack.c.l.b16 %v214
    %v312 = vunpack.c.h.b16 %v214
    %v313 = vpack.c.b16 %v251, %v249
    %v314 = vpack.c.b16 %v252, %v250
    %v315 = vpack.c.b16 %v255, %v253
    %v316 = vpack.c.b16 %v256, %v254
    %v317 = vpack.c.b16 %v259, %v257
    %v318 = vpack.c.b16 %v260, %v258
    %v319 = vpack.c.b16 %v263, %v261
    %v320 = vpack.c.b16 %v264, %v262
    %v321 = vpack.c.b16 %v267, %v265
    %v322 = vpack.c.b16 %v268, %v266
    %v323 = vpack.c.b16 %v271, %v269
    %v324 = vpack.c.b16 %v272, %v270
    %v325 = vpack.c.b16 %v275, %v273
    %v326 = vpack.c.b16 %v276, %v274
    %v327 = vpack.c.b16 %v279, %v277
    %v328 = vpack.c.b16 %v280, %v278
    %v329 = vpack.c.b16 %v283, %v281
    %v330 = vpack.c.b16 %v284, %v282
    %v331 = vpack.c.b16 %v287, %v285
    %v332 = vpack.c.b16 %v288, %v286
    %v333 = vpack.c.b16 %v291, %v289
    %v334 = vpack.c.b16 %v292, %v290
    %v335 = vpack.c.b16 %v295, %v293
    %v336 = vpack.c.b16 %v296, %v294
    %v337 = vpack.c.b16 %v299, %v297
    %v338 = vpack.c.b16 %v300, %v298
    %v339 = vpack.c.b16 %v303, %v301
    %v340 = vpack.c.b16 %v304, %v302
    %v341 = vpack.c.b16 %v307, %v305
    %v342 = vpack.c.b16 %v308, %v306
    %v343 = vpack.c.b16 %v311, %v309
    %v344 = vpack.c.b16 %v312, %v310
    %377 = vmatprep.subr.bf16.mxu0 %v328
    %378 = vmatpush1.bf16.msra.mxu0 %v327
    %379 = vmatprep.subr.bf16.mxu0 %v326
    %380 = vmatpush1.bf16.msra.mxu0 %v325
    %381 = vmatprep.subr.bf16.mxu0 %v324
    %382 = vmatpush1.bf16.msra.mxu0 %v323
    %383 = vmatprep.subr.bf16.mxu0 %v322
    %384 = vmatpush1.bf16.msra.mxu0 %v321
    %385 = vmatprep.subr.bf16.mxu0 %v320
    %386 = vmatpush1.bf16.msra.mxu0 %v319
    %387 = vmatprep.subr.bf16.mxu0 %v318
    %388 = vmatpush1.bf16.msra.mxu0 %v317
    %389 = vmatprep.subr.bf16.mxu0 %v316
    %390 = vmatpush1.bf16.msra.mxu0 %v315
    %391 = vmatprep.subr.bf16.mxu0 %v314
    %392 = vmatpush1.bf16.msra.mxu0 %v313
    %393 = vmatprep.subr.bf16.mxu0 %v344
    %394 = vmatpush2.bf16.msra.mxu0 %v343
    %395 = vmatprep.subr.bf16.mxu0 %v342
    %396 = vmatpush2.bf16.msra.mxu0 %v341
    %397 = vmatprep.subr.bf16.mxu0 %v340
    %398 = vmatpush2.bf16.msra.mxu0 %v339
    %399 = vmatprep.subr.bf16.mxu0 %v338
    %400 = vmatpush2.bf16.msra.mxu0 %v337
    %401 = vmatprep.subr.bf16.mxu0 %v336
    %402 = vmatpush2.bf16.msra.mxu0 %v335
    %403 = vmatprep.subr.bf16.mxu0 %v334
    %404 = vmatpush2.bf16.msra.mxu0 %v333
    %405 = vmatprep.subr.bf16.mxu0 %v332
    %406 = vmatpush2.bf16.msra.mxu0 %v331
    %407 = vmatprep.subr.bf16.mxu0 %v330
    %408 = vmatpush2.bf16.msra.mxu0 %v329
    %409 = vmatprep.mubr.bf16.mxu0 %v182
    %410 = vmatmul.mubr.bf16.gmra.mxu0 %v181
    %v411 = vpop.f32.mrf.mxu0
    %v412 = vadd.f32 0.0, %v411
    %v413 = vpop.f32.mrf.mxu0
    %v414 = vadd.f32 0.0, %v413
    %v415 = vpop.f32.mrf.mxu0
    %v416 = vadd.f32 0.0, %v415
    %v417 = vpop.f32.mrf.mxu0
    %v418 = vadd.f32 0.0, %v417
    %419 = vdwg.mxu0
    %v420 = vpack.c.bf16 %v416, %v412
    %v421 = vpack.c.bf16 %v418, %v414
    %v423 = vlaneseq
    %v424 = vshrl.u32 %v423, 7
    %v425 = vsub.s32 0, %v424
    %v426 = vrot.slane %v216, %v425
    %v427 = vlaneseq
    %v428 = vshrl.u32 %v427, 7
    %v429 = vsub.s32 1, %v428
    %v430 = vrot.slane %v216, %v429
    %433 = vmatprep.subr.bf16.mxu0 0
    %434 = vmatpush1.bf16.msra.mxu0 0
    %435 = vmatprep.subr.bf16.mxu0 0
    %436 = vmatpush1.bf16.msra.mxu0 0
    %437 = vmatprep.subr.bf16.mxu0 0
    %438 = vmatpush1.bf16.msra.mxu0 0
    %439 = vmatprep.subr.bf16.mxu0 0
    %440 = vmatpush1.bf16.msra.mxu0 0
    %441 = vmatprep.subr.bf16.mxu0 0
    %442 = vmatpush1.bf16.msra.mxu0 0
    %443 = vmatprep.subr.bf16.mxu0 0
    %444 = vmatpush1.bf16.msra.mxu0 0
    %445 = vmatprep.subr.bf16.mxu0 0
    %446 = vmatpush1.bf16.msra.mxu0 0
    %447 = vmatprep.subr.bf16.mxu0 %v421
    %448 = vmatpush1.bf16.msra.mxu0 %v420
    %449 = vmatprep.subr.bf16.mxu0 0
    %450 = vmatpush2.bf16.msra.mxu0 0
    %451 = vmatprep.subr.bf16.mxu0 0
    %452 = vmatpush2.bf16.msra.mxu0 0
    %453 = vmatprep.subr.bf16.mxu0 0
    %454 = vmatpush2.bf16.msra.mxu0 0
    %455 = vmatprep.subr.bf16.mxu0 0
    %456 = vmatpush2.bf16.msra.mxu0 0
    %457 = vmatprep.subr.bf16.mxu0 0
    %458 = vmatpush2.bf16.msra.mxu0 0
    %459 = vmatprep.subr.bf16.mxu0 0
    %460 = vmatpush2.bf16.msra.mxu0 0
    %461 = vmatprep.subr.bf16.mxu0 0
    %462 = vmatpush2.bf16.msra.mxu0 0
    %463 = vmatprep.subr.bf16.mxu0 0
    %464 = vmatpush2.bf16.msra.mxu0 0
    %465 = vmatprep.mubr.bf16.mxu0 0
    %466 = vmatmul.mubr.bf16.gmra.mxu0 %v132
    %v467 = vpop.f32.mrf.mxu0
    %v468 = vadd.f32 %v426, %v467
    %v469 = vpop.f32.mrf.mxu0
    %v470 = vadd.f32 %v430, %v469
    %v471 = vpop.f32.mrf.mxu0
    %v472 = vadd.f32 %v426, %v471
    %v473 = vpop.f32.mrf.mxu0
    %v474 = vadd.f32 %v430, %v473
    %475 = vdwg.mxu0
    %v476 = vmax.f32 %v468, 0.0
    %v477 = vmax.f32 %v470, 0.0
    %v478 = vmax.f32 %v472, 0.0
    %v479 = vmax.f32 %v474, 0.0
    %v480 = vpack.c.bf16 %v478, %v476
    %v481 = vpack.c.bf16 %v479, %v477
    %s482 = scalar_lea.vmem %s3, 256
    %v483 = vld [vmem:[%s482] sm:$0xff]
    %v484 = vld [vmem:[%s482 + $0x8] sm:$0xff]
    %v485 = vld [vmem:[%s482 + $0x10] sm:$0xff]
    %v486 = vld [vmem:[%s482 + $0x18] sm:$0xff]
    %v487 = vld [vmem:[%s482 + $0x20] sm:$0xff]
    %v488 = vld [vmem:[%s482 + $0x28] sm:$0xff]
    %v489 = vld [vmem:[%s482 + $0x30] sm:$0xff]
    %v490 = vld [vmem:[%s482 + $0x38] sm:$0xff]
    %v491 = vld [vmem:[%s482 + $0x40] sm:$0xff]
    %v492 = vld [vmem:[%s482 + $0x48] sm:$0xff]
    %v493 = vld [vmem:[%s482 + $0x50] sm:$0xff]
    %v494 = vld [vmem:[%s482 + $0x58] sm:$0xff]
    %v495 = vld [vmem:[%s482 + $0x60] sm:$0xff]
    %v496 = vld [vmem:[%s482 + $0x68] sm:$0xff]
    %v497 = vld [vmem:[%s482 + $0x70] sm:$0xff]
    %v498 = vld [vmem:[%s482 + $0x78] sm:$0xff]
    %v499 = vld [vmem:[%s482 + $0x80] sm:$0xff]
    %v500 = vld [vmem:[%s482 + $0x88] sm:$0xff]
    %v501 = vld [vmem:[%s482 + $0x90] sm:$0xff]
    %v502 = vld [vmem:[%s482 + $0x98] sm:$0xff]
    %v503 = vld [vmem:[%s482 + $0xa0] sm:$0xff]
    %v504 = vld [vmem:[%s482 + $0xa8] sm:$0xff]
    %v505 = vld [vmem:[%s482 + $0xb0] sm:$0xff]
    %v506 = vld [vmem:[%s482 + $0xb8] sm:$0xff]
    %v507 = vld [vmem:[%s482 + $0xc0] sm:$0xff]
    %v508 = vld [vmem:[%s482 + $0xc8] sm:$0xff]
    %v509 = vld [vmem:[%s482 + $0xd0] sm:$0xff]
    %v510 = vld [vmem:[%s482 + $0xd8] sm:$0xff]
    %v511 = vld [vmem:[%s482 + $0xe0] sm:$0xff]
    %v512 = vld [vmem:[%s482 + $0xe8] sm:$0xff]
    %v513 = vld [vmem:[%s482 + $0xf0] sm:$0xff]
    %v514 = vld [vmem:[%s482 + $0xf8] sm:$0xff]
    %s515 = scalar_lea.vmem %s7, 2
    %v516 = vld [vmem:[%s515] ss:$8 sm:$0x3]
    %v549 = vunpack.c.l.b16 %v483
    %v550 = vunpack.c.h.b16 %v483
    %v551 = vunpack.c.l.b16 %v484
    %v552 = vunpack.c.h.b16 %v484
    %v553 = vunpack.c.l.b16 %v485
    %v554 = vunpack.c.h.b16 %v485
    %v555 = vunpack.c.l.b16 %v486
    %v556 = vunpack.c.h.b16 %v486
    %v557 = vunpack.c.l.b16 %v487
    %v558 = vunpack.c.h.b16 %v487
    %v559 = vunpack.c.l.b16 %v488
    %v560 = vunpack.c.h.b16 %v488
    %v561 = vunpack.c.l.b16 %v489
    %v562 = vunpack.c.h.b16 %v489
    %v563 = vunpack.c.l.b16 %v490
    %v564 = vunpack.c.h.b16 %v490
    %v565 = vunpack.c.l.b16 %v491
    %v566 = vunpack.c.h.b16 %v491
    %v567 = vunpack.c.l.b16 %v492
    %v568 = vunpack.c.h.b16 %v492
    %v569 = vunpack.c.l.b16 %v493
    %v570 = vunpack.c.h.b16 %v493
    %v571 = vunpack.c.l.b16 %v494
    %v572 = vunpack.c.h.b16 %v494
    %v573 = vunpack.c.l.b16 %v495
    %v574 = vunpack.c.h.b16 %v495
    %v575 = vunpack.c.l.b16 %v496
    %v576 = vunpack.c.h.b16 %v496
    %v577 = vunpack.c.l.b16 %v497
    %v578 = vunpack.c.h.b16 %v497
    %v579 = vunpack.c.l.b16 %v498
    %v580 = vunpack.c.h.b16 %v498
    %v581 = vunpack.c.l.b16 %v499
    %v582 = vunpack.c.h.b16 %v499
    %v583 = vunpack.c.l.b16 %v500
    %v584 = vunpack.c.h.b16 %v500
    %v585 = vunpack.c.l.b16 %v501
    %v586 = vunpack.c.h.b16 %v501
    %v587 = vunpack.c.l.b16 %v502
    %v588 = vunpack.c.h.b16 %v502
    %v589 = vunpack.c.l.b16 %v503
    %v590 = vunpack.c.h.b16 %v503
    %v591 = vunpack.c.l.b16 %v504
    %v592 = vunpack.c.h.b16 %v504
    %v593 = vunpack.c.l.b16 %v505
    %v594 = vunpack.c.h.b16 %v505
    %v595 = vunpack.c.l.b16 %v506
    %v596 = vunpack.c.h.b16 %v506
    %v597 = vunpack.c.l.b16 %v507
    %v598 = vunpack.c.h.b16 %v507
    %v599 = vunpack.c.l.b16 %v508
    %v600 = vunpack.c.h.b16 %v508
    %v601 = vunpack.c.l.b16 %v509
    %v602 = vunpack.c.h.b16 %v509
    %v603 = vunpack.c.l.b16 %v510
    %v604 = vunpack.c.h.b16 %v510
    %v605 = vunpack.c.l.b16 %v511
    %v606 = vunpack.c.h.b16 %v511
    %v607 = vunpack.c.l.b16 %v512
    %v608 = vunpack.c.h.b16 %v512
    %v609 = vunpack.c.l.b16 %v513
    %v610 = vunpack.c.h.b16 %v513
    %v611 = vunpack.c.l.b16 %v514
    %v612 = vunpack.c.h.b16 %v514
    %v613 = vpack.c.b16 %v551, %v549
    %v614 = vpack.c.b16 %v552, %v550
    %v615 = vpack.c.b16 %v555, %v553
    %v616 = vpack.c.b16 %v556, %v554
    %v617 = vpack.c.b16 %v559, %v557
    %v618 = vpack.c.b16 %v560, %v558
    %v619 = vpack.c.b16 %v563, %v561
    %v620 = vpack.c.b16 %v564, %v562
    %v621 = vpack.c.b16 %v567, %v565
    %v622 = vpack.c.b16 %v568, %v566
    %v623 = vpack.c.b16 %v571, %v569
    %v624 = vpack.c.b16 %v572, %v570
    %v625 = vpack.c.b16 %v575, %v573
    %v626 = vpack.c.b16 %v576, %v574
    %v627 = vpack.c.b16 %v579, %v577
    %v628 = vpack.c.b16 %v580, %v578
    %v629 = vpack.c.b16 %v583, %v581
    %v630 = vpack.c.b16 %v584, %v582
    %v631 = vpack.c.b16 %v587, %v585
    %v632 = vpack.c.b16 %v588, %v586
    %v633 = vpack.c.b16 %v591, %v589
    %v634 = vpack.c.b16 %v592, %v590
    %v635 = vpack.c.b16 %v595, %v593
    %v636 = vpack.c.b16 %v596, %v594
    %v637 = vpack.c.b16 %v599, %v597
    %v638 = vpack.c.b16 %v600, %v598
    %v639 = vpack.c.b16 %v603, %v601
    %v640 = vpack.c.b16 %v604, %v602
    %v641 = vpack.c.b16 %v607, %v605
    %v642 = vpack.c.b16 %v608, %v606
    %v643 = vpack.c.b16 %v611, %v609
    %v644 = vpack.c.b16 %v612, %v610
    %677 = vmatprep.subr.bf16.mxu0 %v628
    %678 = vmatpush1.bf16.msra.mxu0 %v627
    %679 = vmatprep.subr.bf16.mxu0 %v626
    %680 = vmatpush1.bf16.msra.mxu0 %v625
    %681 = vmatprep.subr.bf16.mxu0 %v624
    %682 = vmatpush1.bf16.msra.mxu0 %v623
    %683 = vmatprep.subr.bf16.mxu0 %v622
    %684 = vmatpush1.bf16.msra.mxu0 %v621
    %685 = vmatprep.subr.bf16.mxu0 %v620
    %686 = vmatpush1.bf16.msra.mxu0 %v619
    %687 = vmatprep.subr.bf16.mxu0 %v618
    %688 = vmatpush1.bf16.msra.mxu0 %v617
    %689 = vmatprep.subr.bf16.mxu0 %v616
    %690 = vmatpush1.bf16.msra.mxu0 %v615
    %691 = vmatprep.subr.bf16.mxu0 %v614
    %692 = vmatpush1.bf16.msra.mxu0 %v613
    %693 = vmatprep.subr.bf16.mxu0 %v644
    %694 = vmatpush2.bf16.msra.mxu0 %v643
    %695 = vmatprep.subr.bf16.mxu0 %v642
    %696 = vmatpush2.bf16.msra.mxu0 %v641
    %697 = vmatprep.subr.bf16.mxu0 %v640
    %698 = vmatpush2.bf16.msra.mxu0 %v639
    %699 = vmatprep.subr.bf16.mxu0 %v638
    %700 = vmatpush2.bf16.msra.mxu0 %v637
    %701 = vmatprep.subr.bf16.mxu0 %v636
    %702 = vmatpush2.bf16.msra.mxu0 %v635
    %703 = vmatprep.subr.bf16.mxu0 %v634
    %704 = vmatpush2.bf16.msra.mxu0 %v633
    %705 = vmatprep.subr.bf16.mxu0 %v632
    %706 = vmatpush2.bf16.msra.mxu0 %v631
    %707 = vmatprep.subr.bf16.mxu0 %v630
    %708 = vmatpush2.bf16.msra.mxu0 %v629
    %709 = vmatprep.mubr.bf16.mxu0 %v481
    %710 = vmatmul.mubr.bf16.gmra.mxu0 %v480
    %v711 = vpop.f32.mrf.mxu0
    %v712 = vadd.f32 0.0, %v711
    %v713 = vpop.f32.mrf.mxu0
    %v714 = vadd.f32 0.0, %v713
    %v715 = vpop.f32.mrf.mxu0
    %v716 = vadd.f32 0.0, %v715
    %v717 = vpop.f32.mrf.mxu0
    %v718 = vadd.f32 0.0, %v717
    %719 = vdwg.mxu0
    %v720 = vpack.c.bf16 %v716, %v712
    %v721 = vpack.c.bf16 %v718, %v714
    %v723 = vlaneseq
    %v724 = vshrl.u32 %v723, 7
    %v725 = vsub.s32 0, %v724
    %v726 = vrot.slane %v516, %v725
    %v727 = vlaneseq
    %v728 = vshrl.u32 %v727, 7
    %v729 = vsub.s32 1, %v728
    %v730 = vrot.slane %v516, %v729
    %733 = vmatprep.subr.bf16.mxu0 0
    %734 = vmatpush1.bf16.msra.mxu0 0
    %735 = vmatprep.subr.bf16.mxu0 0
    %736 = vmatpush1.bf16.msra.mxu0 0
    %737 = vmatprep.subr.bf16.mxu0 0
    %738 = vmatpush1.bf16.msra.mxu0 0
    %739 = vmatprep.subr.bf16.mxu0 0
    %740 = vmatpush1.bf16.msra.mxu0 0
    %741 = vmatprep.subr.bf16.mxu0 0
    %742 = vmatpush1.bf16.msra.mxu0 0
    %743 = vmatprep.subr.bf16.mxu0 0
    %744 = vmatpush1.bf16.msra.mxu0 0
    %745 = vmatprep.subr.bf16.mxu0 0
    %746 = vmatpush1.bf16.msra.mxu0 0
    %747 = vmatprep.subr.bf16.mxu0 %v721
    %748 = vmatpush1.bf16.msra.mxu0 %v720
    %749 = vmatprep.subr.bf16.mxu0 0
    %750 = vmatpush2.bf16.msra.mxu0 0
    %751 = vmatprep.subr.bf16.mxu0 0
    %752 = vmatpush2.bf16.msra.mxu0 0
    %753 = vmatprep.subr.bf16.mxu0 0
    %754 = vmatpush2.bf16.msra.mxu0 0
    %755 = vmatprep.subr.bf16.mxu0 0
    %756 = vmatpush2.bf16.msra.mxu0 0
    %757 = vmatprep.subr.bf16.mxu0 0
    %758 = vmatpush2.bf16.msra.mxu0 0
    %759 = vmatprep.subr.bf16.mxu0 0
    %760 = vmatpush2.bf16.msra.mxu0 0
    %761 = vmatprep.subr.bf16.mxu0 0
    %762 = vmatpush2.bf16.msra.mxu0 0
    %763 = vmatprep.subr.bf16.mxu0 0
    %764 = vmatpush2.bf16.msra.mxu0 0
    %765 = vmatprep.mubr.bf16.mxu0 0
    %766 = vmatmul.mubr.bf16.gmra.mxu0 %v132
    %v767 = vpop.f32.mrf.mxu0
    %v768 = vadd.f32 %v726, %v767
    %v769 = vpop.f32.mrf.mxu0
    %v770 = vadd.f32 %v730, %v769
    %v771 = vpop.f32.mrf.mxu0
    %v772 = vadd.f32 %v726, %v771
    %v773 = vpop.f32.mrf.mxu0
    %v774 = vadd.f32 %v730, %v773
    %775 = vdwg.mxu0
    %v776 = vmax.f32 %v768, 0.0
    %v777 = vmax.f32 %v770, 0.0
    %v778 = vmax.f32 %v772, 0.0
    %v779 = vmax.f32 %v774, 0.0
    %v780 = vpack.c.bf16 %v778, %v776
    %v781 = vpack.c.bf16 %v779, %v777
    %s782 = scalar_lea.vmem %s3, 512
    %v783 = vld [vmem:[%s782] sm:$0xff]
    %v784 = vld [vmem:[%s782 + $0x8] sm:$0xff]
    %v785 = vld [vmem:[%s782 + $0x10] sm:$0xff]
    %v786 = vld [vmem:[%s782 + $0x18] sm:$0xff]
    %v787 = vld [vmem:[%s782 + $0x20] sm:$0xff]
    %v788 = vld [vmem:[%s782 + $0x28] sm:$0xff]
    %v789 = vld [vmem:[%s782 + $0x30] sm:$0xff]
    %v790 = vld [vmem:[%s782 + $0x38] sm:$0xff]
    %v791 = vld [vmem:[%s782 + $0x40] sm:$0xff]
    %v792 = vld [vmem:[%s782 + $0x48] sm:$0xff]
    %v793 = vld [vmem:[%s782 + $0x50] sm:$0xff]
    %v794 = vld [vmem:[%s782 + $0x58] sm:$0xff]
    %v795 = vld [vmem:[%s782 + $0x60] sm:$0xff]
    %v796 = vld [vmem:[%s782 + $0x68] sm:$0xff]
    %v797 = vld [vmem:[%s782 + $0x70] sm:$0xff]
    %v798 = vld [vmem:[%s782 + $0x78] sm:$0xff]
    %v799 = vld [vmem:[%s782 + $0x80] sm:$0xff]
    %v800 = vld [vmem:[%s782 + $0x88] sm:$0xff]
    %v801 = vld [vmem:[%s782 + $0x90] sm:$0xff]
    %v802 = vld [vmem:[%s782 + $0x98] sm:$0xff]
    %v803 = vld [vmem:[%s782 + $0xa0] sm:$0xff]
    %v804 = vld [vmem:[%s782 + $0xa8] sm:$0xff]
    %v805 = vld [vmem:[%s782 + $0xb0] sm:$0xff]
    %v806 = vld [vmem:[%s782 + $0xb8] sm:$0xff]
    %v807 = vld [vmem:[%s782 + $0xc0] sm:$0xff]
    %v808 = vld [vmem:[%s782 + $0xc8] sm:$0xff]
    %v809 = vld [vmem:[%s782 + $0xd0] sm:$0xff]
    %v810 = vld [vmem:[%s782 + $0xd8] sm:$0xff]
    %v811 = vld [vmem:[%s782 + $0xe0] sm:$0xff]
    %v812 = vld [vmem:[%s782 + $0xe8] sm:$0xff]
    %v813 = vld [vmem:[%s782 + $0xf0] sm:$0xff]
    %v814 = vld [vmem:[%s782 + $0xf8] sm:$0xff]
    %s815 = scalar_lea.vmem %s7, 3
    %v816 = vld [vmem:[%s815] ss:$8 sm:$0x3]
    %v849 = vunpack.c.l.b16 %v783
    %v850 = vunpack.c.h.b16 %v783
    %v851 = vunpack.c.l.b16 %v784
    %v852 = vunpack.c.h.b16 %v784
    %v853 = vunpack.c.l.b16 %v785
    %v854 = vunpack.c.h.b16 %v785
    %v855 = vunpack.c.l.b16 %v786
    %v856 = vunpack.c.h.b16 %v786
    %v857 = vunpack.c.l.b16 %v787
    %v858 = vunpack.c.h.b16 %v787
    %v859 = vunpack.c.l.b16 %v788
    %v860 = vunpack.c.h.b16 %v788
    %v861 = vunpack.c.l.b16 %v789
    %v862 = vunpack.c.h.b16 %v789
    %v863 = vunpack.c.l.b16 %v790
    %v864 = vunpack.c.h.b16 %v790
    %v865 = vunpack.c.l.b16 %v791
    %v866 = vunpack.c.h.b16 %v791
    %v867 = vunpack.c.l.b16 %v792
    %v868 = vunpack.c.h.b16 %v792
    %v869 = vunpack.c.l.b16 %v793
    %v870 = vunpack.c.h.b16 %v793
    %v871 = vunpack.c.l.b16 %v794
    %v872 = vunpack.c.h.b16 %v794
    %v873 = vunpack.c.l.b16 %v795
    %v874 = vunpack.c.h.b16 %v795
    %v875 = vunpack.c.l.b16 %v796
    %v876 = vunpack.c.h.b16 %v796
    %v877 = vunpack.c.l.b16 %v797
    %v878 = vunpack.c.h.b16 %v797
    %v879 = vunpack.c.l.b16 %v798
    %v880 = vunpack.c.h.b16 %v798
    %v881 = vunpack.c.l.b16 %v799
    %v882 = vunpack.c.h.b16 %v799
    %v883 = vunpack.c.l.b16 %v800
    %v884 = vunpack.c.h.b16 %v800
    %v885 = vunpack.c.l.b16 %v801
    %v886 = vunpack.c.h.b16 %v801
    %v887 = vunpack.c.l.b16 %v802
    %v888 = vunpack.c.h.b16 %v802
    %v889 = vunpack.c.l.b16 %v803
    %v890 = vunpack.c.h.b16 %v803
    %v891 = vunpack.c.l.b16 %v804
    %v892 = vunpack.c.h.b16 %v804
    %v893 = vunpack.c.l.b16 %v805
    %v894 = vunpack.c.h.b16 %v805
    %v895 = vunpack.c.l.b16 %v806
    %v896 = vunpack.c.h.b16 %v806
    %v897 = vunpack.c.l.b16 %v807
    %v898 = vunpack.c.h.b16 %v807
    %v899 = vunpack.c.l.b16 %v808
    %v900 = vunpack.c.h.b16 %v808
    %v901 = vunpack.c.l.b16 %v809
    %v902 = vunpack.c.h.b16 %v809
    %v903 = vunpack.c.l.b16 %v810
    %v904 = vunpack.c.h.b16 %v810
    %v905 = vunpack.c.l.b16 %v811
    %v906 = vunpack.c.h.b16 %v811
    %v907 = vunpack.c.l.b16 %v812
    %v908 = vunpack.c.h.b16 %v812
    %v909 = vunpack.c.l.b16 %v813
    %v910 = vunpack.c.h.b16 %v813
    %v911 = vunpack.c.l.b16 %v814
    %v912 = vunpack.c.h.b16 %v814
    %v913 = vpack.c.b16 %v851, %v849
    %v914 = vpack.c.b16 %v852, %v850
    %v915 = vpack.c.b16 %v855, %v853
    %v916 = vpack.c.b16 %v856, %v854
    %v917 = vpack.c.b16 %v859, %v857
    %v918 = vpack.c.b16 %v860, %v858
    %v919 = vpack.c.b16 %v863, %v861
    %v920 = vpack.c.b16 %v864, %v862
    %v921 = vpack.c.b16 %v867, %v865
    %v922 = vpack.c.b16 %v868, %v866
    %v923 = vpack.c.b16 %v871, %v869
    %v924 = vpack.c.b16 %v872, %v870
    %v925 = vpack.c.b16 %v875, %v873
    %v926 = vpack.c.b16 %v876, %v874
    %v927 = vpack.c.b16 %v879, %v877
    %v928 = vpack.c.b16 %v880, %v878
    %v929 = vpack.c.b16 %v883, %v881
    %v930 = vpack.c.b16 %v884, %v882
    %v931 = vpack.c.b16 %v887, %v885
    %v932 = vpack.c.b16 %v888, %v886
    %v933 = vpack.c.b16 %v891, %v889
    %v934 = vpack.c.b16 %v892, %v890
    %v935 = vpack.c.b16 %v895, %v893
    %v936 = vpack.c.b16 %v896, %v894
    %v937 = vpack.c.b16 %v899, %v897
    %v938 = vpack.c.b16 %v900, %v898
    %v939 = vpack.c.b16 %v903, %v901
    %v940 = vpack.c.b16 %v904, %v902
    %v941 = vpack.c.b16 %v907, %v905
    %v942 = vpack.c.b16 %v908, %v906
    %v943 = vpack.c.b16 %v911, %v909
    %v944 = vpack.c.b16 %v912, %v910
    %977 = vmatprep.subr.bf16.mxu0 %v928
    %978 = vmatpush1.bf16.msra.mxu0 %v927
    %979 = vmatprep.subr.bf16.mxu0 %v926
    %980 = vmatpush1.bf16.msra.mxu0 %v925
    %981 = vmatprep.subr.bf16.mxu0 %v924
    %982 = vmatpush1.bf16.msra.mxu0 %v923
    %983 = vmatprep.subr.bf16.mxu0 %v922
    %984 = vmatpush1.bf16.msra.mxu0 %v921
    %985 = vmatprep.subr.bf16.mxu0 %v920
    %986 = vmatpush1.bf16.msra.mxu0 %v919
    %987 = vmatprep.subr.bf16.mxu0 %v918
    %988 = vmatpush1.bf16.msra.mxu0 %v917
    %989 = vmatprep.subr.bf16.mxu0 %v916
    %990 = vmatpush1.bf16.msra.mxu0 %v915
    %991 = vmatprep.subr.bf16.mxu0 %v914
    %992 = vmatpush1.bf16.msra.mxu0 %v913
    %993 = vmatprep.subr.bf16.mxu0 %v944
    %994 = vmatpush2.bf16.msra.mxu0 %v943
    %995 = vmatprep.subr.bf16.mxu0 %v942
    %996 = vmatpush2.bf16.msra.mxu0 %v941
    %997 = vmatprep.subr.bf16.mxu0 %v940
    %998 = vmatpush2.bf16.msra.mxu0 %v939
    %999 = vmatprep.subr.bf16.mxu0 %v938
    %1000 = vmatpush2.bf16.msra.mxu0 %v937
    %1001 = vmatprep.subr.bf16.mxu0 %v936
    %1002 = vmatpush2.bf16.msra.mxu0 %v935
    %1003 = vmatprep.subr.bf16.mxu0 %v934
    %1004 = vmatpush2.bf16.msra.mxu0 %v933
    %1005 = vmatprep.subr.bf16.mxu0 %v932
    %1006 = vmatpush2.bf16.msra.mxu0 %v931
    %1007 = vmatprep.subr.bf16.mxu0 %v930
    %1008 = vmatpush2.bf16.msra.mxu0 %v929
    %1009 = vmatprep.mubr.bf16.mxu0 %v781
    %1010 = vmatmul.mubr.bf16.gmra.mxu0 %v780
    %v1011 = vpop.f32.mrf.mxu0
    %v1012 = vadd.f32 0.0, %v1011
    %v1013 = vpop.f32.mrf.mxu0
    %v1014 = vadd.f32 0.0, %v1013
    %v1015 = vpop.f32.mrf.mxu0
    %v1016 = vadd.f32 0.0, %v1015
    %v1017 = vpop.f32.mrf.mxu0
    %v1018 = vadd.f32 0.0, %v1017
    %1019 = vdwg.mxu0
    %v1020 = vpack.c.bf16 %v1016, %v1012
    %v1021 = vpack.c.bf16 %v1018, %v1014
    %v1023 = vlaneseq
    %v1024 = vshrl.u32 %v1023, 7
    %v1025 = vsub.s32 0, %v1024
    %v1026 = vrot.slane %v816, %v1025
    %v1027 = vlaneseq
    %v1028 = vshrl.u32 %v1027, 7
    %v1029 = vsub.s32 1, %v1028
    %v1030 = vrot.slane %v816, %v1029
    %1033 = vmatprep.subr.bf16.mxu0 0
    %1034 = vmatpush1.bf16.msra.mxu0 0
    %1035 = vmatprep.subr.bf16.mxu0 0
    %1036 = vmatpush1.bf16.msra.mxu0 0
    %1037 = vmatprep.subr.bf16.mxu0 0
    %1038 = vmatpush1.bf16.msra.mxu0 0
    %1039 = vmatprep.subr.bf16.mxu0 0
    %1040 = vmatpush1.bf16.msra.mxu0 0
    %1041 = vmatprep.subr.bf16.mxu0 0
    %1042 = vmatpush1.bf16.msra.mxu0 0
    %1043 = vmatprep.subr.bf16.mxu0 0
    %1044 = vmatpush1.bf16.msra.mxu0 0
    %1045 = vmatprep.subr.bf16.mxu0 0
    %1046 = vmatpush1.bf16.msra.mxu0 0
    %1047 = vmatprep.subr.bf16.mxu0 %v1021
    %1048 = vmatpush1.bf16.msra.mxu0 %v1020
    %1049 = vmatprep.subr.bf16.mxu0 0
    %1050 = vmatpush2.bf16.msra.mxu0 0
    %1051 = vmatprep.subr.bf16.mxu0 0
    %1052 = vmatpush2.bf16.msra.mxu0 0
    %1053 = vmatprep.subr.bf16.mxu0 0
    %1054 = vmatpush2.bf16.msra.mxu0 0
    %1055 = vmatprep.subr.bf16.mxu0 0
    %1056 = vmatpush2.bf16.msra.mxu0 0
    %1057 = vmatprep.subr.bf16.mxu0 0
    %1058 = vmatpush2.bf16.msra.mxu0 0
    %1059 = vmatprep.subr.bf16.mxu0 0
    %1060 = vmatpush2.bf16.msra.mxu0 0
    %1061 = vmatprep.subr.bf16.mxu0 0
    %1062 = vmatpush2.bf16.msra.mxu0 0
    %1063 = vmatprep.subr.bf16.mxu0 0
    %1064 = vmatpush2.bf16.msra.mxu0 0
    %1065 = vmatprep.mubr.bf16.mxu0 0
    %1066 = vmatmul.mubr.bf16.gmra.mxu0 %v132
    %v1067 = vpop.f32.mrf.mxu0
    %v1068 = vadd.f32 %v1026, %v1067
    %v1069 = vpop.f32.mrf.mxu0
    %v1070 = vadd.f32 %v1030, %v1069
    %v1071 = vpop.f32.mrf.mxu0
    %v1072 = vadd.f32 %v1026, %v1071
    %v1073 = vpop.f32.mrf.mxu0
    %v1074 = vadd.f32 %v1030, %v1073
    %1075 = vdwg.mxu0
    %v1076 = vmax.f32 %v1068, 0.0
    %v1077 = vmax.f32 %v1070, 0.0
    %v1078 = vmax.f32 %v1072, 0.0
    %v1079 = vmax.f32 %v1074, 0.0
    %v1080 = vpack.c.bf16 %v1078, %v1076
    %v1081 = vpack.c.bf16 %v1079, %v1077
    %s1082 = scalar_lea.vmem %s3, 768
    %v1083 = vld [vmem:[%s1082] sm:$0xff]
    %v1084 = vld [vmem:[%s1082 + $0x8] sm:$0xff]
    %v1085 = vld [vmem:[%s1082 + $0x10] sm:$0xff]
    %v1086 = vld [vmem:[%s1082 + $0x18] sm:$0xff]
    %v1087 = vld [vmem:[%s1082 + $0x20] sm:$0xff]
    %v1088 = vld [vmem:[%s1082 + $0x28] sm:$0xff]
    %v1089 = vld [vmem:[%s1082 + $0x30] sm:$0xff]
    %v1090 = vld [vmem:[%s1082 + $0x38] sm:$0xff]
    %v1091 = vld [vmem:[%s1082 + $0x40] sm:$0xff]
    %v1092 = vld [vmem:[%s1082 + $0x48] sm:$0xff]
    %v1093 = vld [vmem:[%s1082 + $0x50] sm:$0xff]
    %v1094 = vld [vmem:[%s1082 + $0x58] sm:$0xff]
    %v1095 = vld [vmem:[%s1082 + $0x60] sm:$0xff]
    %v1096 = vld [vmem:[%s1082 + $0x68] sm:$0xff]
    %v1097 = vld [vmem:[%s1082 + $0x70] sm:$0xff]
    %v1098 = vld [vmem:[%s1082 + $0x78] sm:$0xff]
    %v1099 = vld [vmem:[%s1082 + $0x80] sm:$0xff]
    %v1100 = vld [vmem:[%s1082 + $0x88] sm:$0xff]
    %v1101 = vld [vmem:[%s1082 + $0x90] sm:$0xff]
    %v1102 = vld [vmem:[%s1082 + $0x98] sm:$0xff]
    %v1103 = vld [vmem:[%s1082 + $0xa0] sm:$0xff]
    %v1104 = vld [vmem:[%s1082 + $0xa8] sm:$0xff]
    %v1105 = vld [vmem:[%s1082 + $0xb0] sm:$0xff]
    %v1106 = vld [vmem:[%s1082 + $0xb8] sm:$0xff]
    %v1107 = vld [vmem:[%s1082 + $0xc0] sm:$0xff]
    %v1108 = vld [vmem:[%s1082 + $0xc8] sm:$0xff]
    %v1109 = vld [vmem:[%s1082 + $0xd0] sm:$0xff]
    %v1110 = vld [vmem:[%s1082 + $0xd8] sm:$0xff]
    %v1111 = vld [vmem:[%s1082 + $0xe0] sm:$0xff]
    %v1112 = vld [vmem:[%s1082 + $0xe8] sm:$0xff]
    %v1113 = vld [vmem:[%s1082 + $0xf0] sm:$0xff]
    %v1114 = vld [vmem:[%s1082 + $0xf8] sm:$0xff]
    %s1115 = scalar_lea.vmem %s7, 4
    %v1116 = vld [vmem:[%s1115] ss:$8 sm:$0x3]
    %v1149 = vunpack.c.l.b16 %v1083
    %v1150 = vunpack.c.h.b16 %v1083
    %v1151 = vunpack.c.l.b16 %v1084
    %v1152 = vunpack.c.h.b16 %v1084
    %v1153 = vunpack.c.l.b16 %v1085
    %v1154 = vunpack.c.h.b16 %v1085
    %v1155 = vunpack.c.l.b16 %v1086
    %v1156 = vunpack.c.h.b16 %v1086
    %v1157 = vunpack.c.l.b16 %v1087
    %v1158 = vunpack.c.h.b16 %v1087
    %v1159 = vunpack.c.l.b16 %v1088
    %v1160 = vunpack.c.h.b16 %v1088
    %v1161 = vunpack.c.l.b16 %v1089
    %v1162 = vunpack.c.h.b16 %v1089
    %v1163 = vunpack.c.l.b16 %v1090
    %v1164 = vunpack.c.h.b16 %v1090
    %v1165 = vunpack.c.l.b16 %v1091
    %v1166 = vunpack.c.h.b16 %v1091
    %v1167 = vunpack.c.l.b16 %v1092
    %v1168 = vunpack.c.h.b16 %v1092
    %v1169 = vunpack.c.l.b16 %v1093
    %v1170 = vunpack.c.h.b16 %v1093
    %v1171 = vunpack.c.l.b16 %v1094
    %v1172 = vunpack.c.h.b16 %v1094
    %v1173 = vunpack.c.l.b16 %v1095
    %v1174 = vunpack.c.h.b16 %v1095
    %v1175 = vunpack.c.l.b16 %v1096
    %v1176 = vunpack.c.h.b16 %v1096
    %v1177 = vunpack.c.l.b16 %v1097
    %v1178 = vunpack.c.h.b16 %v1097
    %v1179 = vunpack.c.l.b16 %v1098
    %v1180 = vunpack.c.h.b16 %v1098
    %v1181 = vunpack.c.l.b16 %v1099
    %v1182 = vunpack.c.h.b16 %v1099
    %v1183 = vunpack.c.l.b16 %v1100
    %v1184 = vunpack.c.h.b16 %v1100
    %v1185 = vunpack.c.l.b16 %v1101
    %v1186 = vunpack.c.h.b16 %v1101
    %v1187 = vunpack.c.l.b16 %v1102
    %v1188 = vunpack.c.h.b16 %v1102
    %v1189 = vunpack.c.l.b16 %v1103
    %v1190 = vunpack.c.h.b16 %v1103
    %v1191 = vunpack.c.l.b16 %v1104
    %v1192 = vunpack.c.h.b16 %v1104
    %v1193 = vunpack.c.l.b16 %v1105
    %v1194 = vunpack.c.h.b16 %v1105
    %v1195 = vunpack.c.l.b16 %v1106
    %v1196 = vunpack.c.h.b16 %v1106
    %v1197 = vunpack.c.l.b16 %v1107
    %v1198 = vunpack.c.h.b16 %v1107
    %v1199 = vunpack.c.l.b16 %v1108
    %v1200 = vunpack.c.h.b16 %v1108
    %v1201 = vunpack.c.l.b16 %v1109
    %v1202 = vunpack.c.h.b16 %v1109
    %v1203 = vunpack.c.l.b16 %v1110
    %v1204 = vunpack.c.h.b16 %v1110
    %v1205 = vunpack.c.l.b16 %v1111
    %v1206 = vunpack.c.h.b16 %v1111
    %v1207 = vunpack.c.l.b16 %v1112
    %v1208 = vunpack.c.h.b16 %v1112
    %v1209 = vunpack.c.l.b16 %v1113
    %v1210 = vunpack.c.h.b16 %v1113
    %v1211 = vunpack.c.l.b16 %v1114
    %v1212 = vunpack.c.h.b16 %v1114
    %v1213 = vpack.c.b16 %v1151, %v1149
    %v1214 = vpack.c.b16 %v1152, %v1150
    %v1215 = vpack.c.b16 %v1155, %v1153
    %v1216 = vpack.c.b16 %v1156, %v1154
    %v1217 = vpack.c.b16 %v1159, %v1157
    %v1218 = vpack.c.b16 %v1160, %v1158
    %v1219 = vpack.c.b16 %v1163, %v1161
    %v1220 = vpack.c.b16 %v1164, %v1162
    %v1221 = vpack.c.b16 %v1167, %v1165
    %v1222 = vpack.c.b16 %v1168, %v1166
    %v1223 = vpack.c.b16 %v1171, %v1169
    %v1224 = vpack.c.b16 %v1172, %v1170
    %v1225 = vpack.c.b16 %v1175, %v1173
    %v1226 = vpack.c.b16 %v1176, %v1174
    %v1227 = vpack.c.b16 %v1179, %v1177
    %v1228 = vpack.c.b16 %v1180, %v1178
    %v1229 = vpack.c.b16 %v1183, %v1181
    %v1230 = vpack.c.b16 %v1184, %v1182
    %v1231 = vpack.c.b16 %v1187, %v1185
    %v1232 = vpack.c.b16 %v1188, %v1186
    %v1233 = vpack.c.b16 %v1191, %v1189
    %v1234 = vpack.c.b16 %v1192, %v1190
    %v1235 = vpack.c.b16 %v1195, %v1193
    %v1236 = vpack.c.b16 %v1196, %v1194
    %v1237 = vpack.c.b16 %v1199, %v1197
    %v1238 = vpack.c.b16 %v1200, %v1198
    %v1239 = vpack.c.b16 %v1203, %v1201
    %v1240 = vpack.c.b16 %v1204, %v1202
    %v1241 = vpack.c.b16 %v1207, %v1205
    %v1242 = vpack.c.b16 %v1208, %v1206
    %v1243 = vpack.c.b16 %v1211, %v1209
    %v1244 = vpack.c.b16 %v1212, %v1210
    %1277 = vmatprep.subr.bf16.mxu0 %v1228
    %1278 = vmatpush1.bf16.msra.mxu0 %v1227
    %1279 = vmatprep.subr.bf16.mxu0 %v1226
    %1280 = vmatpush1.bf16.msra.mxu0 %v1225
    %1281 = vmatprep.subr.bf16.mxu0 %v1224
    %1282 = vmatpush1.bf16.msra.mxu0 %v1223
    %1283 = vmatprep.subr.bf16.mxu0 %v1222
    %1284 = vmatpush1.bf16.msra.mxu0 %v1221
    %1285 = vmatprep.subr.bf16.mxu0 %v1220
    %1286 = vmatpush1.bf16.msra.mxu0 %v1219
    %1287 = vmatprep.subr.bf16.mxu0 %v1218
    %1288 = vmatpush1.bf16.msra.mxu0 %v1217
    %1289 = vmatprep.subr.bf16.mxu0 %v1216
    %1290 = vmatpush1.bf16.msra.mxu0 %v1215
    %1291 = vmatprep.subr.bf16.mxu0 %v1214
    %1292 = vmatpush1.bf16.msra.mxu0 %v1213
    %1293 = vmatprep.subr.bf16.mxu0 %v1244
    %1294 = vmatpush2.bf16.msra.mxu0 %v1243
    %1295 = vmatprep.subr.bf16.mxu0 %v1242
    %1296 = vmatpush2.bf16.msra.mxu0 %v1241
    %1297 = vmatprep.subr.bf16.mxu0 %v1240
    %1298 = vmatpush2.bf16.msra.mxu0 %v1239
    %1299 = vmatprep.subr.bf16.mxu0 %v1238
    %1300 = vmatpush2.bf16.msra.mxu0 %v1237
    %1301 = vmatprep.subr.bf16.mxu0 %v1236
    %1302 = vmatpush2.bf16.msra.mxu0 %v1235
    %1303 = vmatprep.subr.bf16.mxu0 %v1234
    %1304 = vmatpush2.bf16.msra.mxu0 %v1233
    %1305 = vmatprep.subr.bf16.mxu0 %v1232
    %1306 = vmatpush2.bf16.msra.mxu0 %v1231
    %1307 = vmatprep.subr.bf16.mxu0 %v1230
    %1308 = vmatpush2.bf16.msra.mxu0 %v1229
    %1309 = vmatprep.mubr.bf16.mxu0 %v1081
    %1310 = vmatmul.mubr.bf16.gmra.mxu0 %v1080
    %v1311 = vpop.f32.mrf.mxu0
    %v1312 = vadd.f32 0.0, %v1311
    %v1313 = vpop.f32.mrf.mxu0
    %v1314 = vadd.f32 0.0, %v1313
    %v1315 = vpop.f32.mrf.mxu0
    %v1316 = vadd.f32 0.0, %v1315
    %v1317 = vpop.f32.mrf.mxu0
    %v1318 = vadd.f32 0.0, %v1317
    %1319 = vdwg.mxu0
    %v1320 = vpack.c.bf16 %v1316, %v1312
    %v1321 = vpack.c.bf16 %v1318, %v1314
    %v1323 = vlaneseq
    %v1324 = vshrl.u32 %v1323, 7
    %v1325 = vsub.s32 0, %v1324
    %v1326 = vrot.slane %v1116, %v1325
    %v1327 = vlaneseq
    %v1328 = vshrl.u32 %v1327, 7
    %v1329 = vsub.s32 1, %v1328
    %v1330 = vrot.slane %v1116, %v1329
    %1333 = vmatprep.subr.bf16.mxu0 0
    %1334 = vmatpush1.bf16.msra.mxu0 0
    %1335 = vmatprep.subr.bf16.mxu0 0
    %1336 = vmatpush1.bf16.msra.mxu0 0
    %1337 = vmatprep.subr.bf16.mxu0 0
    %1338 = vmatpush1.bf16.msra.mxu0 0
    %1339 = vmatprep.subr.bf16.mxu0 0
    %1340 = vmatpush1.bf16.msra.mxu0 0
    %1341 = vmatprep.subr.bf16.mxu0 0
    %1342 = vmatpush1.bf16.msra.mxu0 0
    %1343 = vmatprep.subr.bf16.mxu0 0
    %1344 = vmatpush1.bf16.msra.mxu0 0
    %1345 = vmatprep.subr.bf16.mxu0 0
    %1346 = vmatpush1.bf16.msra.mxu0 0
    %1347 = vmatprep.subr.bf16.mxu0 %v1321
    %1348 = vmatpush1.bf16.msra.mxu0 %v1320
    %1349 = vmatprep.subr.bf16.mxu0 0
    %1350 = vmatpush2.bf16.msra.mxu0 0
    %1351 = vmatprep.subr.bf16.mxu0 0
    %1352 = vmatpush2.bf16.msra.mxu0 0
    %1353 = vmatprep.subr.bf16.mxu0 0
    %1354 = vmatpush2.bf16.msra.mxu0 0
    %1355 = vmatprep.subr.bf16.mxu0 0
    %1356 = vmatpush2.bf16.msra.mxu0 0
    %1357 = vmatprep.subr.bf16.mxu0 0
    %1358 = vmatpush2.bf16.msra.mxu0 0
    %1359 = vmatprep.subr.bf16.mxu0 0
    %1360 = vmatpush2.bf16.msra.mxu0 0
    %1361 = vmatprep.subr.bf16.mxu0 0
    %1362 = vmatpush2.bf16.msra.mxu0 0
    %1363 = vmatprep.subr.bf16.mxu0 0
    %1364 = vmatpush2.bf16.msra.mxu0 0
    %1365 = vmatprep.mubr.bf16.mxu0 0
    %1366 = vmatmul.mubr.bf16.gmra.mxu0 %v132
    %v1367 = vpop.f32.mrf.mxu0
    %v1368 = vadd.f32 %v1326, %v1367
    %v1369 = vpop.f32.mrf.mxu0
    %v1370 = vadd.f32 %v1330, %v1369
    %v1371 = vpop.f32.mrf.mxu0
    %v1372 = vadd.f32 %v1326, %v1371
    %v1373 = vpop.f32.mrf.mxu0
    %v1374 = vadd.f32 %v1330, %v1373
    %1375 = vdwg.mxu0
    %v1376 = vmax.f32 %v1368, 0.0
    %v1377 = vmax.f32 %v1370, 0.0
    %v1378 = vmax.f32 %v1372, 0.0
    %v1379 = vmax.f32 %v1374, 0.0
    %v1380 = vpack.c.bf16 %v1378, %v1376
    %v1381 = vpack.c.bf16 %v1379, %v1377
    %v1382 = vld [vmem:[%s4] sm:$0xf]
    %v1383 = vld [vmem:[%s4 + $0x4] sm:$0xf]
    %v1384 = vld [vmem:[%s4 + $0x8] sm:$0xf]
    %v1385 = vld [vmem:[%s4 + $0xc] sm:$0xf]
    %v1386 = vld [vmem:[%s4 + $0x10] sm:$0xf]
    %v1387 = vld [vmem:[%s4 + $0x14] sm:$0xf]
    %v1388 = vld [vmem:[%s4 + $0x18] sm:$0xf]
    %v1389 = vld [vmem:[%s4 + $0x1c] sm:$0xf]
    %v1390 = vld [vmem:[%s4 + $0x20] sm:$0xf]
    %v1391 = vld [vmem:[%s4 + $0x24] sm:$0xf]
    %v1392 = vld [vmem:[%s4 + $0x28] sm:$0xf]
    %v1393 = vld [vmem:[%s4 + $0x2c] sm:$0xf]
    %v1394 = vld [vmem:[%s4 + $0x30] sm:$0xf]
    %v1395 = vld [vmem:[%s4 + $0x34] sm:$0xf]
    %v1396 = vld [vmem:[%s4 + $0x38] sm:$0xf]
    %v1397 = vld [vmem:[%s4 + $0x3c] sm:$0xf]
    %v1398 = vld [vmem:[%s4 + $0x40] sm:$0xf]
    %v1399 = vld [vmem:[%s4 + $0x44] sm:$0xf]
    %v1400 = vld [vmem:[%s4 + $0x48] sm:$0xf]
    %v1401 = vld [vmem:[%s4 + $0x4c] sm:$0xf]
    %v1402 = vld [vmem:[%s4 + $0x50] sm:$0xf]
    %v1403 = vld [vmem:[%s4 + $0x54] sm:$0xf]
    %v1404 = vld [vmem:[%s4 + $0x58] sm:$0xf]
    %v1405 = vld [vmem:[%s4 + $0x5c] sm:$0xf]
    %v1406 = vld [vmem:[%s4 + $0x60] sm:$0xf]
    %v1407 = vld [vmem:[%s4 + $0x64] sm:$0xf]
    %v1408 = vld [vmem:[%s4 + $0x68] sm:$0xf]
    %v1409 = vld [vmem:[%s4 + $0x6c] sm:$0xf]
    %v1410 = vld [vmem:[%s4 + $0x70] sm:$0xf]
    %v1411 = vld [vmem:[%s4 + $0x74] sm:$0xf]
    %v1412 = vld [vmem:[%s4 + $0x78] sm:$0xf]
    %v1413 = vld [vmem:[%s4 + $0x7c] sm:$0xf]
    %v1414 = vld [vmem:[%s7 + $0x5] ss:$0 sm:$0xff]
    %v1447 = vunpack.c.l.b16 %v1382
    %v1448 = vunpack.c.l.b16 %v1383
    %v1449 = vunpack.c.l.b16 %v1384
    %v1450 = vunpack.c.l.b16 %v1385
    %v1451 = vunpack.c.l.b16 %v1386
    %v1452 = vunpack.c.l.b16 %v1387
    %v1453 = vunpack.c.l.b16 %v1388
    %v1454 = vunpack.c.l.b16 %v1389
    %v1455 = vunpack.c.l.b16 %v1390
    %v1456 = vunpack.c.l.b16 %v1391
    %v1457 = vunpack.c.l.b16 %v1392
    %v1458 = vunpack.c.l.b16 %v1393
    %v1459 = vunpack.c.l.b16 %v1394
    %v1460 = vunpack.c.l.b16 %v1395
    %v1461 = vunpack.c.l.b16 %v1396
    %v1462 = vunpack.c.l.b16 %v1397
    %v1463 = vunpack.c.l.b16 %v1398
    %v1464 = vunpack.c.l.b16 %v1399
    %v1465 = vunpack.c.l.b16 %v1400
    %v1466 = vunpack.c.l.b16 %v1401
    %v1467 = vunpack.c.l.b16 %v1402
    %v1468 = vunpack.c.l.b16 %v1403
    %v1469 = vunpack.c.l.b16 %v1404
    %v1470 = vunpack.c.l.b16 %v1405
    %v1471 = vunpack.c.l.b16 %v1406
    %v1472 = vunpack.c.l.b16 %v1407
    %v1473 = vunpack.c.l.b16 %v1408
    %v1474 = vunpack.c.l.b16 %v1409
    %v1475 = vunpack.c.l.b16 %v1410
    %v1476 = vunpack.c.l.b16 %v1411
    %v1477 = vunpack.c.l.b16 %v1412
    %v1478 = vunpack.c.l.b16 %v1413
    %v1479 = vpack.c.b16 %v1448, %v1447
    %v1480 = vpack.c.b16 %v1450, %v1449
    %v1481 = vpack.c.b16 %v1452, %v1451
    %v1482 = vpack.c.b16 %v1454, %v1453
    %v1483 = vpack.c.b16 %v1456, %v1455
    %v1484 = vpack.c.b16 %v1458, %v1457
    %v1485 = vpack.c.b16 %v1460, %v1459
    %v1486 = vpack.c.b16 %v1462, %v1461
    %v1487 = vpack.c.b16 %v1464, %v1463
    %v1488 = vpack.c.b16 %v1466, %v1465
    %v1489 = vpack.c.b16 %v1468, %v1467
    %v1490 = vpack.c.b16 %v1470, %v1469
    %v1491 = vpack.c.b16 %v1472, %v1471
    %v1492 = vpack.c.b16 %v1474, %v1473
    %v1493 = vpack.c.b16 %v1476, %v1475
    %v1494 = vpack.c.b16 %v1478, %v1477
    %1511 = vmatprep.subr.bf16.mxu0 0
    %1512 = vmatpush1.bf16.msra.mxu0 %v1486
    %1513 = vmatprep.subr.bf16.mxu0 0
    %1514 = vmatpush1.bf16.msra.mxu0 %v1485
    %1515 = vmatprep.subr.bf16.mxu0 0
    %1516 = vmatpush1.bf16.msra.mxu0 %v1484
    %1517 = vmatprep.subr.bf16.mxu0 0
    %1518 = vmatpush1.bf16.msra.mxu0 %v1483
    %1519 = vmatprep.subr.bf16.mxu0 0
    %1520 = vmatpush1.bf16.msra.mxu0 %v1482
    %1521 = vmatprep.subr.bf16.mxu0 0
    %1522 = vmatpush1.bf16.msra.mxu0 %v1481
    %1523 = vmatprep.subr.bf16.mxu0 0
    %1524 = vmatpush1.bf16.msra.mxu0 %v1480
    %1525 = vmatprep.subr.bf16.mxu0 0
    %1526 = vmatpush1.bf16.msra.mxu0 %v1479
    %1527 = vmatprep.subr.bf16.mxu0 0
    %1528 = vmatpush2.bf16.msra.mxu0 %v1494
    %1529 = vmatprep.subr.bf16.mxu0 0
    %1530 = vmatpush2.bf16.msra.mxu0 %v1493
    %1531 = vmatprep.subr.bf16.mxu0 0
    %1532 = vmatpush2.bf16.msra.mxu0 %v1492
    %1533 = vmatprep.subr.bf16.mxu0 0
    %1534 = vmatpush2.bf16.msra.mxu0 %v1491
    %1535 = vmatprep.subr.bf16.mxu0 0
    %1536 = vmatpush2.bf16.msra.mxu0 %v1490
    %1537 = vmatprep.subr.bf16.mxu0 0
    %1538 = vmatpush2.bf16.msra.mxu0 %v1489
    %1539 = vmatprep.subr.bf16.mxu0 0
    %1540 = vmatpush2.bf16.msra.mxu0 %v1488
    %1541 = vmatprep.subr.bf16.mxu0 0
    %1542 = vmatpush2.bf16.msra.mxu0 %v1487
    %1543 = vmatprep.mubr.bf16.mxu0 %v1381
    %1544 = vmatmul.mubr.bf16.gmra.mxu0 %v1380
    %v1545 = vpop.f32.mrf.mxu0
    %v1546 = vadd.f32 0.0, %v1545
    %v1547 = vpop.f32.mrf.mxu0
    %v1548 = vpop.f32.mrf.mxu0
    %v1549 = vadd.f32 0.0, %v1548
    %v1550 = vpop.f32.mrf.mxu0
    %1551 = vdwg.mxu0
    %v1552 = vpack.c.bf16 %v1549, %v1546
    %1553 = vmatprep.subr.bf16.mxu0 0
    %1554 = vmatpush1.bf16.msra.mxu0 0
    %1555 = vmatprep.subr.bf16.mxu0 0
    %1556 = vmatpush1.bf16.msra.mxu0 0
    %1557 = vmatprep.subr.bf16.mxu0 0
    %1558 = vmatpush1.bf16.msra.mxu0 0
    %1559 = vmatprep.subr.bf16.mxu0 0
    %1560 = vmatpush1.bf16.msra.mxu0 0
    %1561 = vmatprep.subr.bf16.mxu0 0
    %1562 = vmatpush1.bf16.msra.mxu0 0
    %1563 = vmatprep.subr.bf16.mxu0 0
    %1564 = vmatpush1.bf16.msra.mxu0 0
    %1565 = vmatprep.subr.bf16.mxu0 0
    %1566 = vmatpush1.bf16.msra.mxu0 0
    %1567 = vmatprep.subr.bf16.mxu0 0
    %1568 = vmatpush1.bf16.msra.mxu0 %v1552
    %1569 = vmatprep.subr.bf16.mxu0 0
    %1570 = vmatpush2.bf16.msra.mxu0 0
    %1571 = vmatprep.subr.bf16.mxu0 0
    %1572 = vmatpush2.bf16.msra.mxu0 0
    %1573 = vmatprep.subr.bf16.mxu0 0
    %1574 = vmatpush2.bf16.msra.mxu0 0
    %1575 = vmatprep.subr.bf16.mxu0 0
    %1576 = vmatpush2.bf16.msra.mxu0 0
    %1577 = vmatprep.subr.bf16.mxu0 0
    %1578 = vmatpush2.bf16.msra.mxu0 0
    %1579 = vmatprep.subr.bf16.mxu0 0
    %1580 = vmatpush2.bf16.msra.mxu0 0
    %1581 = vmatprep.subr.bf16.mxu0 0
    %1582 = vmatpush2.bf16.msra.mxu0 0
    %1583 = vmatprep.subr.bf16.mxu0 0
    %1584 = vmatpush2.bf16.msra.mxu0 0
    %1585 = vmatprep.mubr.bf16.mxu0 0
    %1586 = vmatmul.mubr.bf16.gmra.mxu0 %v132
    %v1587 = vpop.f32.mrf.mxu0
    %v1588 = vadd.f32 %v1414, %v1587
    %v1589 = vpop.f32.mrf.mxu0
    %v1590 = vpop.f32.mrf.mxu0
    %v1591 = vadd.f32 %v1414, %v1590
    %v1592 = vpop.f32.mrf.mxu0
    %1593 = vdwg.mxu0
    %v1594 = vmax.f32 %v1588, 0.0
    %v1595 = vmax.f32 %v1591, 0.0
    %v1596 = vpack.c.bf16 %v1595, %v1594
    %v1597 = vld [vmem:[%s5] sm:$0xf]
    %v1598 = vld [vmem:[%s5 + $0x4] sm:$0xf]
    %v1599 = vld [vmem:[%s5 + $0x8] sm:$0xf]
    %v1600 = vld [vmem:[%s5 + $0xc] sm:$0xf]
    %v1601 = vld [vmem:[%s5 + $0x10] sm:$0xf]
    %v1602 = vld [vmem:[%s5 + $0x14] sm:$0xf]
    %v1603 = vld [vmem:[%s5 + $0x18] sm:$0xf]
    %v1604 = vld [vmem:[%s5 + $0x1c] sm:$0xf]
    %v1605 = vld [vmem:[%s5 + $0x20] sm:$0xf]
    %v1606 = vld [vmem:[%s5 + $0x24] sm:$0xf]
    %v1607 = vld [vmem:[%s5 + $0x28] sm:$0xf]
    %v1608 = vld [vmem:[%s5 + $0x2c] sm:$0xf]
    %v1609 = vld [vmem:[%s5 + $0x30] sm:$0xf]
    %v1610 = vld [vmem:[%s5 + $0x34] sm:$0xf]
    %v1611 = vld [vmem:[%s5 + $0x38] sm:$0xf]
    %v1612 = vld [vmem:[%s5 + $0x3c] sm:$0xf]
    %v1613 = vld [vmem:[%s7 + $0x6] ss:$0 sm:$0xff]
    %v1630 = vunpack.c.l.b16 %v1597
    %v1631 = vunpack.c.l.b16 %v1598
    %v1632 = vunpack.c.l.b16 %v1599
    %v1633 = vunpack.c.l.b16 %v1600
    %v1634 = vunpack.c.l.b16 %v1601
    %v1635 = vunpack.c.l.b16 %v1602
    %v1636 = vunpack.c.l.b16 %v1603
    %v1637 = vunpack.c.l.b16 %v1604
    %v1638 = vunpack.c.l.b16 %v1605
    %v1639 = vunpack.c.l.b16 %v1606
    %v1640 = vunpack.c.l.b16 %v1607
    %v1641 = vunpack.c.l.b16 %v1608
    %v1642 = vunpack.c.l.b16 %v1609
    %v1643 = vunpack.c.l.b16 %v1610
    %v1644 = vunpack.c.l.b16 %v1611
    %v1645 = vunpack.c.l.b16 %v1612
    %v1646 = vpack.c.b16 %v1631, %v1630
    %v1647 = vpack.c.b16 %v1633, %v1632
    %v1648 = vpack.c.b16 %v1635, %v1634
    %v1649 = vpack.c.b16 %v1637, %v1636
    %v1650 = vpack.c.b16 %v1639, %v1638
    %v1651 = vpack.c.b16 %v1641, %v1640
    %v1652 = vpack.c.b16 %v1643, %v1642
    %v1653 = vpack.c.b16 %v1645, %v1644
    %1662 = vmatprep.subr.bf16.mxu0 0
    %1663 = vmatpush1.bf16.msra.mxu0 %v1653
    %1664 = vmatprep.subr.bf16.mxu0 0
    %1665 = vmatpush1.bf16.msra.mxu0 %v1652
    %1666 = vmatprep.subr.bf16.mxu0 0
    %1667 = vmatpush1.bf16.msra.mxu0 %v1651
    %1668 = vmatprep.subr.bf16.mxu0 0
    %1669 = vmatpush1.bf16.msra.mxu0 %v1650
    %1670 = vmatprep.subr.bf16.mxu0 0
    %1671 = vmatpush1.bf16.msra.mxu0 %v1649
    %1672 = vmatprep.subr.bf16.mxu0 0
    %1673 = vmatpush1.bf16.msra.mxu0 %v1648
    %1674 = vmatprep.subr.bf16.mxu0 0
    %1675 = vmatpush1.bf16.msra.mxu0 %v1647
    %1676 = vmatprep.subr.bf16.mxu0 0
    %1677 = vmatpush1.bf16.msra.mxu0 %v1646
    %1678 = vmatprep.subr.bf16.mxu0 0
    %1679 = vmatpush2.bf16.msra.mxu0 0
    %1680 = vmatprep.subr.bf16.mxu0 0
    %1681 = vmatpush2.bf16.msra.mxu0 0
    %1682 = vmatprep.subr.bf16.mxu0 0
    %1683 = vmatpush2.bf16.msra.mxu0 0
    %1684 = vmatprep.subr.bf16.mxu0 0
    %1685 = vmatpush2.bf16.msra.mxu0 0
    %1686 = vmatprep.subr.bf16.mxu0 0
    %1687 = vmatpush2.bf16.msra.mxu0 0
    %1688 = vmatprep.subr.bf16.mxu0 0
    %1689 = vmatpush2.bf16.msra.mxu0 0
    %1690 = vmatprep.subr.bf16.mxu0 0
    %1691 = vmatpush2.bf16.msra.mxu0 0
    %1692 = vmatprep.subr.bf16.mxu0 0
    %1693 = vmatpush2.bf16.msra.mxu0 0
    %1694 = vmatprep.mubr.bf16.mxu0 0
    %1695 = vmatmul.mubr.bf16.gmra.mxu0 %v1596
    %v1696 = vpop.f32.mrf.mxu0
    %v1697 = vadd.f32 0.0, %v1696
    %v1698 = vpop.f32.mrf.mxu0
    %v1699 = vpop.f32.mrf.mxu0
    %v1700 = vadd.f32 0.0, %v1699
    %v1701 = vpop.f32.mrf.mxu0
    %1702 = vdwg.mxu0
    %v1703 = vpack.c.bf16 %v1700, %v1697
    %1704 = vmatprep.subr.bf16.mxu0 0
    %1705 = vmatpush1.bf16.msra.mxu0 0
    %1706 = vmatprep.subr.bf16.mxu0 0
    %1707 = vmatpush1.bf16.msra.mxu0 0
    %1708 = vmatprep.subr.bf16.mxu0 0
    %1709 = vmatpush1.bf16.msra.mxu0 0
    %1710 = vmatprep.subr.bf16.mxu0 0
    %1711 = vmatpush1.bf16.msra.mxu0 0
    %1712 = vmatprep.subr.bf16.mxu0 0
    %1713 = vmatpush1.bf16.msra.mxu0 0
    %1714 = vmatprep.subr.bf16.mxu0 0
    %1715 = vmatpush1.bf16.msra.mxu0 0
    %1716 = vmatprep.subr.bf16.mxu0 0
    %1717 = vmatpush1.bf16.msra.mxu0 0
    %1718 = vmatprep.subr.bf16.mxu0 0
    %1719 = vmatpush1.bf16.msra.mxu0 %v1703
    %1720 = vmatprep.subr.bf16.mxu0 0
    %1721 = vmatpush2.bf16.msra.mxu0 0
    %1722 = vmatprep.subr.bf16.mxu0 0
    %1723 = vmatpush2.bf16.msra.mxu0 0
    %1724 = vmatprep.subr.bf16.mxu0 0
    %1725 = vmatpush2.bf16.msra.mxu0 0
    %1726 = vmatprep.subr.bf16.mxu0 0
    %1727 = vmatpush2.bf16.msra.mxu0 0
    %1728 = vmatprep.subr.bf16.mxu0 0
    %1729 = vmatpush2.bf16.msra.mxu0 0
    %1730 = vmatprep.subr.bf16.mxu0 0
    %1731 = vmatpush2.bf16.msra.mxu0 0
    %1732 = vmatprep.subr.bf16.mxu0 0
    %1733 = vmatpush2.bf16.msra.mxu0 0
    %1734 = vmatprep.subr.bf16.mxu0 0
    %1735 = vmatpush2.bf16.msra.mxu0 0
    %1736 = vmatprep.mubr.bf16.mxu0 0
    %1737 = vmatmul.mubr.bf16.gmra.mxu0 %v132
    %v1738 = vpop.f32.mrf.mxu0
    %v1739 = vadd.f32 %v1613, %v1738
    %v1740 = vpop.f32.mrf.mxu0
    %v1741 = vpop.f32.mrf.mxu0
    %v1742 = vadd.f32 %v1613, %v1741
    %v1743 = vpop.f32.mrf.mxu0
    %1744 = vdwg.mxu0
    %v1745 = vmax.f32 %v1739, 0.0
    %v1746 = vmax.f32 %v1742, 0.0
    %v1747 = vpack.c.bf16 %v1746, %v1745
    %v1748 = vld [vmem:[%s6] sm:$0xf]
    %v1749 = vld [vmem:[%s6 + $0x4] sm:$0xf]
    %v1750 = vld [vmem:[%s6 + $0x8] sm:$0xf]
    %v1751 = vld [vmem:[%s6 + $0xc] sm:$0xf]
    %v1752 = vld [vmem:[%s6 + $0x10] sm:$0xf]
    %v1753 = vld [vmem:[%s6 + $0x14] sm:$0xf]
    %v1754 = vld [vmem:[%s6 + $0x18] sm:$0xf]
    %v1755 = vld [vmem:[%s6 + $0x1c] sm:$0xf]
    %v1756 = vld [vmem:[%s6 + $0x20] sm:$0xf]
    %v1757 = vld [vmem:[%s6 + $0x24] sm:$0xf]
    %v1758 = vld [vmem:[%s6 + $0x28] sm:$0xf]
    %v1759 = vld [vmem:[%s6 + $0x2c] sm:$0xf]
    %v1760 = vld [vmem:[%s6 + $0x30] sm:$0xf]
    %v1761 = vld [vmem:[%s6 + $0x34] sm:$0xf]
    %v1762 = vld [vmem:[%s6 + $0x38] sm:$0xf]
    %v1763 = vld [vmem:[%s6 + $0x3c] sm:$0xf]
    %v1764 = vld [vmem:[%s7 + $0x7] ss:$0 sm:$0xff]
    %v1781 = vunpack.c.l.b16 %v1748
    %v1782 = vunpack.c.l.b16 %v1749
    %v1783 = vunpack.c.l.b16 %v1750
    %v1784 = vunpack.c.l.b16 %v1751
    %v1785 = vunpack.c.l.b16 %v1752
    %v1786 = vunpack.c.l.b16 %v1753
    %v1787 = vunpack.c.l.b16 %v1754
    %v1788 = vunpack.c.l.b16 %v1755
    %v1789 = vunpack.c.l.b16 %v1756
    %v1790 = vunpack.c.l.b16 %v1757
    %v1791 = vunpack.c.l.b16 %v1758
    %v1792 = vunpack.c.l.b16 %v1759
    %v1793 = vunpack.c.l.b16 %v1760
    %v1794 = vunpack.c.l.b16 %v1761
    %v1795 = vunpack.c.l.b16 %v1762
    %v1796 = vunpack.c.l.b16 %v1763
    %v1797 = vpack.c.b16 %v1782, %v1781
    %v1798 = vpack.c.b16 %v1784, %v1783
    %v1799 = vpack.c.b16 %v1786, %v1785
    %v1800 = vpack.c.b16 %v1788, %v1787
    %v1801 = vpack.c.b16 %v1790, %v1789
    %v1802 = vpack.c.b16 %v1792, %v1791
    %v1803 = vpack.c.b16 %v1794, %v1793
    %v1804 = vpack.c.b16 %v1796, %v1795
    %1813 = vmatprep.subr.bf16.mxu0 0
    %1814 = vmatpush1.bf16.msra.mxu0 %v1804
    %1815 = vmatprep.subr.bf16.mxu0 0
    %1816 = vmatpush1.bf16.msra.mxu0 %v1803
    %1817 = vmatprep.subr.bf16.mxu0 0
    %1818 = vmatpush1.bf16.msra.mxu0 %v1802
    %1819 = vmatprep.subr.bf16.mxu0 0
    %1820 = vmatpush1.bf16.msra.mxu0 %v1801
    %1821 = vmatprep.subr.bf16.mxu0 0
    %1822 = vmatpush1.bf16.msra.mxu0 %v1800
    %1823 = vmatprep.subr.bf16.mxu0 0
    %1824 = vmatpush1.bf16.msra.mxu0 %v1799
    %1825 = vmatprep.subr.bf16.mxu0 0
    %1826 = vmatpush1.bf16.msra.mxu0 %v1798
    %1827 = vmatprep.subr.bf16.mxu0 0
    %1828 = vmatpush1.bf16.msra.mxu0 %v1797
    %1829 = vmatprep.subr.bf16.mxu0 0
    %1830 = vmatpush2.bf16.msra.mxu0 0
    %1831 = vmatprep.subr.bf16.mxu0 0
    %1832 = vmatpush2.bf16.msra.mxu0 0
    %1833 = vmatprep.subr.bf16.mxu0 0
    %1834 = vmatpush2.bf16.msra.mxu0 0
    %1835 = vmatprep.subr.bf16.mxu0 0
    %1836 = vmatpush2.bf16.msra.mxu0 0
    %1837 = vmatprep.subr.bf16.mxu0 0
    %1838 = vmatpush2.bf16.msra.mxu0 0
    %1839 = vmatprep.subr.bf16.mxu0 0
    %1840 = vmatpush2.bf16.msra.mxu0 0
    %1841 = vmatprep.subr.bf16.mxu0 0
    %1842 = vmatpush2.bf16.msra.mxu0 0
    %1843 = vmatprep.subr.bf16.mxu0 0
    %1844 = vmatpush2.bf16.msra.mxu0 0
    %1845 = vmatprep.mubr.bf16.mxu0 0
    %1846 = vmatmul.mubr.bf16.gmra.mxu0 %v1747
    %v1847 = vpop.f32.mrf.mxu0
    %v1848 = vadd.f32 0.0, %v1847
    %v1849 = vpop.f32.mrf.mxu0
    %v1850 = vpop.f32.mrf.mxu0
    %v1851 = vadd.f32 0.0, %v1850
    %v1852 = vpop.f32.mrf.mxu0
    %1853 = vdwg.mxu0
    %v1854 = vpack.c.bf16 %v1851, %v1848
    %1855 = vmatprep.subr.bf16.mxu0 0
    %1856 = vmatpush1.bf16.msra.mxu0 0
    %1857 = vmatprep.subr.bf16.mxu0 0
    %1858 = vmatpush1.bf16.msra.mxu0 0
    %1859 = vmatprep.subr.bf16.mxu0 0
    %1860 = vmatpush1.bf16.msra.mxu0 0
    %1861 = vmatprep.subr.bf16.mxu0 0
    %1862 = vmatpush1.bf16.msra.mxu0 0
    %1863 = vmatprep.subr.bf16.mxu0 0
    %1864 = vmatpush1.bf16.msra.mxu0 0
    %1865 = vmatprep.subr.bf16.mxu0 0
    %1866 = vmatpush1.bf16.msra.mxu0 0
    %1867 = vmatprep.subr.bf16.mxu0 0
    %1868 = vmatpush1.bf16.msra.mxu0 0
    %1869 = vmatprep.subr.bf16.mxu0 0
    %1870 = vmatpush1.bf16.msra.mxu0 %v1854
    %1871 = vmatprep.subr.bf16.mxu0 0
    %1872 = vmatpush2.bf16.msra.mxu0 0
    %1873 = vmatprep.subr.bf16.mxu0 0
    %1874 = vmatpush2.bf16.msra.mxu0 0
    %1875 = vmatprep.subr.bf16.mxu0 0
    %1876 = vmatpush2.bf16.msra.mxu0 0
    %1877 = vmatprep.subr.bf16.mxu0 0
    %1878 = vmatpush2.bf16.msra.mxu0 0
    %1879 = vmatprep.subr.bf16.mxu0 0
    %1880 = vmatpush2.bf16.msra.mxu0 0
    %1881 = vmatprep.subr.bf16.mxu0 0
    %1882 = vmatpush2.bf16.msra.mxu0 0
    %1883 = vmatprep.subr.bf16.mxu0 0
    %1884 = vmatpush2.bf16.msra.mxu0 0
    %1885 = vmatprep.subr.bf16.mxu0 0
    %1886 = vmatpush2.bf16.msra.mxu0 0
    %1887 = vmatprep.mubr.bf16.mxu0 0
    %1888 = vmatmul.mubr.bf16.gmra.mxu0 %v132
    %v1889 = vpop.f32.mrf.mxu0
    %v1890 = vadd.f32 %v1764, %v1889
    %v1891 = vpop.f32.mrf.mxu0
    %v1892 = vpop.f32.mrf.mxu0
    %v1893 = vadd.f32 %v1764, %v1892
    %v1894 = vpop.f32.mrf.mxu0
    %1895 = vdwg.mxu0
    %v1896 = vmax.f32 %v1890, 0.0
    %v1897 = vmax.f32 %v1893, 0.0
    %vm1898 = vcmask 523264
    %v1899 = vsel %vm1898, %v1896, -inf
    %1900 = vmax.xlane.f32.xlu0 %v1899
    %v1901 = vpop.xlane.xlu0 %1900
    %v1902 = vsel %vm1898, %v1897, -inf
    %1903 = vmax.xlane.f32.xlu0 %v1902
    %v1904 = vpop.xlane.xlu0 %1903
    %v1905 = vsub.f32 %v1896, %v1901
    %v1906 = vsub.f32 %v1897, %v1904
    %v1907 = vmul.f32 %v1905, 1.442695
    %v1908 = vpow.pop %v1907
    %v1909 = vmul.f32 %v1906, 1.442695
    %v1910 = vpow.pop %v1909
    %v1911 = vsel %vm1898, %v1908, 0.0
    %1912 = vadd.xlane.f32.xlu0 %v1911
    %v1913 = vpop.xlane.xlu0 %1912
    %v1914 = vsel %vm1898, %v1910, 0.0
    %1915 = vadd.xlane.f32.xlu0 %v1914
    %v1916 = vpop.xlane.xlu0 %1915
    %v1917 = vlog2.pop %v1913
    %v1918 = vmul.f32 %v1917, 0.6931472
    %v1919 = vlog2.pop %v1916
    %v1920 = vmul.f32 %v1919, 0.6931472
    %v1921 = vsub.f32 %v1905, %v1918
    %v1922 = vsub.f32 %v1906, %v1920
    %1923 = vst.msk [vmem:[#allocation2] sm:$0xff] %vm1898, %v1921
    %1924 = vst.msk [vmem:[#allocation2 + $0x8] sm:$0xff] %vm1898, %v1922
    // Predicated region
    $region34: #{gcn9_forward.1} parent=1 // pred_check
      _
    $region35: #{gcn9_forward.1} parent=1 // pred_check_branch
      %1926 = sbr.rel (0) target = $region37
    $region36: #{gcn9_forward.1} parent=1 // pred_region
      %s1928 = ssub.s32 256, 256
      %1929 = vsyncadd [#allocation3], %s1928
      %s1930 = sshll.u32 [#allocation2], 4
      %s1931 = int_to_ptr.vmem [resolvable:$true] %s1930
      %1936 = dma.vmem_to_hbm [thread:$0]  %s1931, 256, %s8, [#allocation3], 128, 128, 8
    $region37: #{gcn9_forward.1} parent=1 // pred_fallthru
      _
    // Predicated region
    $region38: #{gcn9_forward.1} parent=1 // pred_check
      _
    $region39: #{gcn9_forward.1} parent=1 // pred_check_branch
      %1938 = sbr.rel (0) target = $region41
    $region40: #{gcn9_forward.1} parent=1 // pred_region
      %1939 = dma.done [#allocation3], 256
    $region41: #{gcn9_forward.1} parent=1 // pred_fallthru
      _
    %1940 = vsyncpa [#allocation3], 1

</llo_original>
